<compile_context>
chip_gen: v5e
topology: v5e:2x2
jax: 0.10.0
libtpu: 0.0.40
codegen_flags: <defaults>
</compile_context>

<pallas_src>
import functools

import jax
import jax.numpy as jnp
from jax import lax
from jax.experimental import pallas as pl
from jax.experimental.pallas import tpu as pltpu


def _round_up(x, m):
    return ((x + m - 1) // m) * m


def _tcn_kernel(x_ref, *refs, layer_cfg, K, L, B_TILE, PAD, cps, cp_max):
    """Fused TCN forward for a (B_TILE, L) tile of batch elements.

    refs = [per-layer weight refs ...] + [o_ref, pad_ref]
    per layer: w1 (K, CPi, CPo) bf16, b1 (1, CPo) f32, w2 (K, CPo, CPo) bf16,
    b2 (1, CPo) f32, [wd (CPi, CPo) bf16, bd (1, CPo) f32 if downsample].
    layer_cfg: tuple of (dilation, has_downsample).
    cps: per-layer lane-padded channel widths [CP_in, CP_0, CP_1, ...].
    """
    n_w = sum(6 if has_ds else 4 for _, has_ds in layer_cfg)
    w_refs = refs[:n_w]
    o_ref = refs[n_w]
    pad_ref = refs[n_w + 1]              # (B_TILE*(PAD+L), cp_max) bf16

    M = B_TILE * L
    STRIDE = PAD + L                     # rows per batch element in scratch

    # Zero each element's causal-history region once; the convs only ever
    # write rows [b*STRIDE+PAD : b*STRIDE+PAD+L), so these rows stay zero.
    for b in range(B_TILE):
        pad_ref[pl.ds(b * STRIDE, PAD), :] = jnp.zeros((PAD, cp_max),
                                                       jnp.bfloat16)

    def causal_conv(h, w_ref, b_ref, dilation, cpi):
        # h: (M, cpi) f32.  Left-padding (K-1)*dilation zeros per batch
        # element reproduces PyTorch conv(padding=(K-1)*d) + Chomp1d.
        hb = h.astype(jnp.bfloat16)      # pack once on (M, cpi)
        for b in range(B_TILE):
            pad_ref[pl.ds(b * STRIDE + PAD, L), pl.ds(0, cpi)] = (
                hb[b * L:(b + 1) * L, :])
        y = None
        # Per-tap dots accumulated in f32 (no lane concat / wide bf16 cast).
        for j in range(K):
            shift = (K - 1 - j) * dilation
            parts = [pad_ref[pl.ds(b * STRIDE + PAD - shift, L),
                             pl.ds(0, cpi)] for b in range(B_TILE)]
            tap = parts[0] if B_TILE == 1 else jnp.concatenate(parts, axis=0)
            d = jnp.dot(tap, w_ref[j], preferred_element_type=jnp.float32)
            y = d if y is None else y + d
        return y + b_ref[...]

    # Stack the batch tile into M rows:  h is (M, CP_in) f32.
    xs = [x_ref[b] for b in range(B_TILE)]
    h = (xs[0] if B_TILE == 1 else jnp.concatenate(xs, axis=0))
    h = h.astype(jnp.float32)

    idx = 0
    for li, (dilation, has_ds) in enumerate(layer_cfg):
        cpi, cpo = cps[li], cps[li + 1]
        w1, b1, w2, b2 = w_refs[idx:idx + 4]
        idx += 4
        if has_ds:
            wd, bd = w_refs[idx:idx + 2]
            idx += 2
        x_in = h
        # conv1 -> chomp -> ReLU   (dropout == identity at inference)
        h = jnp.maximum(causal_conv(h, w1, b1, dilation, cpi), 0.0)
        # conv2 -> chomp -> ReLU
        h = jnp.maximum(causal_conv(h, w2, b2, dilation, cpo), 0.0)
        if has_ds:
            res = jnp.dot(x_in.astype(jnp.bfloat16), wd[...],
                          preferred_element_type=jnp.float32) + bd[...]
        else:
            res = x_in
        h = jnp.maximum(h + res, 0.0)

    hf = h.astype(o_ref.dtype)
    for b in range(B_TILE):
        o_ref[b] = hf[b * L:(b + 1) * L, :]


def _pick_batch_tile(N, L):
    """Batch elements folded per grid step: target >=256 matmul rows, but keep
    >=2 parallel grid steps (v7x has 2 TensorCores) when that still leaves
    >=128 rows per step."""
    divs = [d for d in range(1, N + 1) if N % d == 0]
    cap = max(1, 256 // max(L, 1))
    cands = [d for d in divs if d <= cap] or [1]
    bt = max(cands)
    if N // bt < 2:
        smaller = [d for d in cands if N // d >= 2 and d * L >= 128]
        if smaller:
            bt = max(smaller)
    return bt


def temporal_conv_net(x_ncl, params):
    """Full TCN forward.  x_ncl: (N, C_in, L) like PyTorch Conv1d layout."""
    N, C_in, L = x_ncl.shape
    K = params[0]["w1"].shape[0]
    chans = [C_in] + [p["w1"].shape[2] for p in params]
    C_out = chans[-1]
    cps = [_round_up(c, 128) for c in chans]        # per-layer lane widths
    cp_max = max(cps)
    max_shift = max((K - 1) * p["dilation"] for p in params)
    PAD = max(8, _round_up(max_shift, 8))           # causal-history rows
    B_TILE = _pick_batch_tile(N, L)

    # Host-side packing: input -> (N, L, CP0) bf16 (it feeds a bf16 MXU op
    # inside the kernel anyway; halves input HBM traffic).
    x_nlc = jnp.transpose(x_ncl, (0, 2, 1))
    x_pad = (jnp.zeros((N, L, cps[0]), jnp.float32)
             .at[:, :, :C_in].set(x_nlc).astype(jnp.bfloat16))

    # Weights as (K, CPin, CPout) bf16 slabs (per-tap MXU dots); biases f32.
    # All weight blocks are grid-invariant -> single-buffer them.
    def w_spec(shape):
        nd = len(shape)
        return pl.BlockSpec(shape, lambda n: (0,) * nd,
                            pipeline_mode=pl.Buffered(1))

    w_args, w_specs, layer_cfg = [], [], []
    for li, p in enumerate(params):
        cin, cout = p["w1"].shape[1], p["w1"].shape[2]
        cpi, cpo = cps[li], cps[li + 1]
        has_ds = "wd" in p
        w1 = (jnp.zeros((K, cpi, cpo), jnp.float32)
              .at[:, :cin, :cout].set(p["w1"]).astype(jnp.bfloat16))
        b1 = jnp.zeros((1, cpo), jnp.float32).at[:, :cout].set(p["b1"])
        w2 = (jnp.zeros((K, cpo, cpo), jnp.float32)
              .at[:, :cout, :cout].set(p["w2"]).astype(jnp.bfloat16))
        b2 = jnp.zeros((1, cpo), jnp.float32).at[:, :cout].set(p["b2"])
        w_args += [w1, b1, w2, b2]
        w_specs += [w_spec((K, cpi, cpo)), w_spec((1, cpo)),
                    w_spec((K, cpo, cpo)), w_spec((1, cpo))]
        if has_ds:
            wd = (jnp.zeros((cpi, cpo), jnp.float32)
                  .at[:cin, :cout].set(p["wd"]).astype(jnp.bfloat16))
            bd = jnp.zeros((1, cpo), jnp.float32).at[:, :cout].set(p["bd"])
            w_args += [wd, bd]
            w_specs += [w_spec((cpi, cpo)), w_spec((1, cpo))]
        layer_cfg.append((p["dilation"], has_ds))

    # Explicit VMEM budget (weights single-buffered, I/O double-buffered,
    # bf16 history scratch, headroom for live f32 activations).
    weight_bytes = sum(int(a.size) * a.dtype.itemsize for a in w_args)
    io_bytes = 2 * B_TILE * L * (cps[0] * 2 + cps[-1] * 4)
    scratch_bytes = B_TILE * (PAD + L) * cp_max * 2
    act_bytes = 4 * B_TILE * L * cp_max * 4
    est = weight_bytes + io_bytes + scratch_bytes + act_bytes
    vmem_limit = int(min(96 * 2**20, max(32 * 2**20, 2 * est + 8 * 2**20)))

    kernel = functools.partial(_tcn_kernel, layer_cfg=tuple(layer_cfg),
                               K=K, L=L, B_TILE=B_TILE, PAD=PAD,
                               cps=tuple(cps), cp_max=cp_max)

    out = pl.pallas_call(
        kernel,
        out_shape=jax.ShapeDtypeStruct((N, L, cps[-1]), jnp.float32),
        grid_spec=pltpu.PrefetchScalarGridSpec(
            num_scalar_prefetch=0,
            grid=(N // B_TILE,),
            in_specs=[pl.BlockSpec((B_TILE, L, cps[0]), lambda n: (n, 0, 0))]
                     + w_specs,
            out_specs=pl.BlockSpec((B_TILE, L, cps[-1]), lambda n: (n, 0, 0)),
            scratch_shapes=[pltpu.VMEM((B_TILE * (PAD + L), cp_max),
                                       jnp.bfloat16)],
        ),
        compiler_params=pltpu.CompilerParams(
            dimension_semantics=("parallel",),
            vmem_limit_bytes=vmem_limit),
    )(x_pad, *w_args)

    return jnp.transpose(out[:, :, :C_out], (0, 2, 1))    # (N, C_out, L)


def init_tcn_params(key, num_inputs, num_channels, kernel_size=2):
    """Deterministic synthetic init matching the module's shapes.

    conv weights ~ N(0, 0.01) (weight_norm collapses to its effective weight
    at inference), rounded to bf16-representable values so the bf16-MXU kernel
    and the f32 reference use identical effective weights; biases
    ~ U(-1/sqrt(fan_in), 1/sqrt(fan_in)) like Conv1d.  Weights stored as
    (K, Cin, Cout) for the (rows, channels)-layout matmuls.
    """
    def wn(k, shape):
        w = 0.01 * jax.random.normal(k, shape, jnp.float32)
        return w.astype(jnp.bfloat16).astype(jnp.float32)

    params = []
    cin = num_inputs
    for i, cout in enumerate(num_channels):
        key, k1, k2, k3, k4, k5, k6 = jax.random.split(key, 7)
        b1_bound = 1.0 / (cin * kernel_size) ** 0.5
        b2_bound = 1.0 / (cout * kernel_size) ** 0.5
        layer = {
            "w1": wn(k1, (kernel_size, cin, cout)),
            "b1": jax.random.uniform(k2, (1, cout), jnp.float32, -b1_bound, b1_bound),
            "w2": wn(k3, (kernel_size, cout, cout)),
            "b2": jax.random.uniform(k4, (1, cout), jnp.float32, -b2_bound, b2_bound),
            "dilation": 2 ** i,
        }
        if cin != cout:
            bd_bound = 1.0 / cin ** 0.5
            layer["wd"] = wn(k5, (cin, cout))
            layer["bd"] = jax.random.uniform(k6, (1, cout), jnp.float32,
                                             -bd_bound, bd_bound)
        params.append(layer)
        cin = cout
    return params


# ---------------- pure-JAX reference (for correctness check) ----------------

def _ref_causal_conv1d(x_ncl, w_kio, b, dilation):
    K = w_kio.shape[0]
    pad = (K - 1) * dilation
    w_oik = jnp.transpose(w_kio, (2, 1, 0))                # (Cout, Cin, K)
    y = lax.conv_general_dilated(
        x_ncl, w_oik, window_strides=(1,), padding=[(pad, pad)],
        rhs_dilation=(dilation,), dimension_numbers=("NCH", "OIH", "NCH"))
    y = y[:, :, : x_ncl.shape[2]]                          # chomp
    return y + b.reshape(1, -1, 1)


def temporal_conv_net_ref(x_ncl, params):
    y = x_ncl
    for layer in params:
        d = layer["dilation"]
        h = jax.nn.relu(_ref_causal_conv1d(y, layer["w1"], layer["b1"], d))
        h = jax.nn.relu(_ref_causal_conv1d(h, layer["w2"], layer["b2"], d))
        if "wd" in layer:
            res = jnp.einsum("ncl,co->nol", y, layer["wd"])
            res = res + layer["bd"].reshape(1, -1, 1)
        else:
            res = y
        y = jax.nn.relu(h + res)
    return y


if __name__ == "__main__":
    key = jax.random.PRNGKey(0)
    kx, kp = jax.random.split(key)

    N, C_IN, L = 2, 4, 16
    NUM_CHANNELS = [32, 32, 16]      # downsample in blocks 0 and 2, identity in 1
    KERNEL_SIZE = 2

    x = jax.random.normal(kx, (N, C_IN, L), jnp.float32)
    params = init_tcn_params(kp, C_IN, NUM_CHANNELS, kernel_size=KERNEL_SIZE)

    out = temporal_conv_net(x, params)
    out = jax.block_until_ready(out)

    assert out.shape == (N, NUM_CHANNELS[-1], L), out.shape

    ref = temporal_conv_net_ref(x, params)
    if not jnp.allclose(out, ref, atol=3e-3, rtol=3e-3):
        err = float(jnp.max(jnp.abs(out - ref)))
        raise AssertionError(f"Pallas TCN output mismatches JAX reference (max err {err})")

    print("KERNEL_OK")
</pallas_src>

<mosaic_0001>
module attributes {stable_mosaic.version = 11 : i64} {
  func.func @_tcn_kernel(%arg0: i32, %arg1: memref<2x16x128xbf16, #tpu.memory_space<vmem>>, %arg2: memref<2x128x128xbf16, #tpu.memory_space<vmem>>, %arg3: memref<1x128xf32, #tpu.memory_space<vmem>>, %arg4: memref<2x128x128xbf16, #tpu.memory_space<vmem>>, %arg5: memref<1x128xf32, #tpu.memory_space<vmem>>, %arg6: memref<128x128xbf16, #tpu.memory_space<vmem>>, %arg7: memref<1x128xf32, #tpu.memory_space<vmem>>, %arg8: memref<2x128x128xbf16, #tpu.memory_space<vmem>>, %arg9: memref<1x128xf32, #tpu.memory_space<vmem>>, %arg10: memref<2x128x128xbf16, #tpu.memory_space<vmem>>, %arg11: memref<1x128xf32, #tpu.memory_space<vmem>>, %arg12: memref<2x128x128xbf16, #tpu.memory_space<vmem>>, %arg13: memref<1x128xf32, #tpu.memory_space<vmem>>, %arg14: memref<2x128x128xbf16, #tpu.memory_space<vmem>>, %arg15: memref<1x128xf32, #tpu.memory_space<vmem>>, %arg16: memref<128x128xbf16, #tpu.memory_space<vmem>>, %arg17: memref<1x128xf32, #tpu.memory_space<vmem>>, %arg18: memref<2x16x128xf32, #tpu.memory_space<vmem>>, %arg19: memref<48x128xbf16, #tpu.memory_space<vmem>>) attributes {dimension_semantics = [#tpu.dimension_semantics<parallel>], iteration_bounds = array<i64: 1>, scalar_prefetch = 0 : i64, scratch_operands = 1 : i64, tpu.core_type = #tpu.core_type<tc>, window_params = [{transform_indices = @transform_0, window_bounds = array<i64: 2, 16, 128>}, {pipeline_mode = #tpu.pipeline_mode<synchronous>, transform_indices = @transform_1, window_bounds = array<i64: 2, 128, 128>}, {pipeline_mode = #tpu.pipeline_mode<synchronous>, transform_indices = @transform_2, window_bounds = array<i64: 1, 128>}, {pipeline_mode = #tpu.pipeline_mode<synchronous>, transform_indices = @transform_3, window_bounds = array<i64: 2, 128, 128>}, {pipeline_mode = #tpu.pipeline_mode<synchronous>, transform_indices = @transform_4, window_bounds = array<i64: 1, 128>}, {pipeline_mode = #tpu.pipeline_mode<synchronous>, transform_indices = @transform_5, window_bounds = array<i64: 128, 128>}, {pipeline_mode = #tpu.pipeline_mode<synchronous>, transform_indices = @transform_6, window_bounds = array<i64: 1, 128>}, {pipeline_mode = #tpu.pipeline_mode<synchronous>, transform_indices = @transform_7, window_bounds = array<i64: 2, 128, 128>}, {pipeline_mode = #tpu.pipeline_mode<synchronous>, transform_indices = @transform_8, window_bounds = array<i64: 1, 128>}, {pipeline_mode = #tpu.pipeline_mode<synchronous>, transform_indices = @transform_9, window_bounds = array<i64: 2, 128, 128>}, {pipeline_mode = #tpu.pipeline_mode<synchronous>, transform_indices = @transform_10, window_bounds = array<i64: 1, 128>}, {pipeline_mode = #tpu.pipeline_mode<synchronous>, transform_indices = @transform_11, window_bounds = array<i64: 2, 128, 128>}, {pipeline_mode = #tpu.pipeline_mode<synchronous>, transform_indices = @transform_12, window_bounds = array<i64: 1, 128>}, {pipeline_mode = #tpu.pipeline_mode<synchronous>, transform_indices = @transform_13, window_bounds = array<i64: 2, 128, 128>}, {pipeline_mode = #tpu.pipeline_mode<synchronous>, transform_indices = @transform_14, window_bounds = array<i64: 1, 128>}, {pipeline_mode = #tpu.pipeline_mode<synchronous>, transform_indices = @transform_15, window_bounds = array<i64: 128, 128>}, {pipeline_mode = #tpu.pipeline_mode<synchronous>, transform_indices = @transform_16, window_bounds = array<i64: 1, 128>}, {transform_indices = @transform_17, window_bounds = array<i64: 2, 16, 128>}]} {
    %cst = arith.constant 0.000000e+00 : bf16
    %0 = vector.broadcast %cst : bf16 to vector<8x128xbf16>
    %c0 = arith.constant 0 : index
    %c0_0 = arith.constant 0 : index
    %1 = vector.load %arg19[%c0, %c0_0] : memref<48x128xbf16, #tpu.memory_space<vmem>>, vector<8x128xbf16>
    tpu.vector_store %arg19[%c0, %c0_0], %0 {strides = array<i32>} : memref<48x128xbf16, #tpu.memory_space<vmem>>, vector<8x128xbf16>,
    %cst_1 = arith.constant 0.000000e+00 : bf16
    %2 = vector.broadcast %cst_1 : bf16 to vector<8x128xbf16>
    %c24 = arith.constant 24 : index
    %c0_2 = arith.constant 0 : index
    %3 = vector.load %arg19[%c24, %c0_2] : memref<48x128xbf16, #tpu.memory_space<vmem>>, vector<8x128xbf16>
    tpu.vector_store %arg19[%c24, %c0_2], %2 {strides = array<i32>} : memref<48x128xbf16, #tpu.memory_space<vmem>>, vector<8x128xbf16>,
    %c0_3 = arith.constant 0 : index
    %c0_4 = arith.constant 0 : index
    %c0_5 = arith.constant 0 : index
    %4 = vector.load %arg1[%c0_3, %c0_4, %c0_5] : memref<2x16x128xbf16, #tpu.memory_space<vmem>>, vector<1x16x128xbf16>
    %5 = vector.shape_cast %4 : vector<1x16x128xbf16> to vector<16x128xbf16>
    %c1 = arith.constant 1 : index
    %c0_6 = arith.constant 0 : index
    %c0_7 = arith.constant 0 : index
    %6 = vector.load %arg1[%c1, %c0_6, %c0_7] : memref<2x16x128xbf16, #tpu.memory_space<vmem>>, vector<1x16x128xbf16>
    %7 = vector.shape_cast %6 : vector<1x16x128xbf16> to vector<16x128xbf16>
    %8 = tpu.concatenate %5, %7 in 0 : vector<16x128xbf16>, vector<16x128xbf16> -> vector<32x128xbf16>
    %9 = arith.extf %8 : vector<32x128xbf16> to vector<32x128xf32>
    %10 = arith.truncf %9 : vector<32x128xf32> to vector<32x128xbf16>
    %11 = vector.extract_strided_slice %10 {offsets = [0, 0], sizes = [16, 128], strides = [1, 1]} : vector<32x128xbf16> to vector<16x128xbf16>
    %c8 = arith.constant 8 : index
    %c0_8 = arith.constant 0 : index
    %12 = vector.load %arg19[%c8, %c0_8] : memref<48x128xbf16, #tpu.memory_space<vmem>>, vector<16x128xbf16>
    tpu.vector_store %arg19[%c8, %c0_8], %11 {strides = array<i32>} : memref<48x128xbf16, #tpu.memory_space<vmem>>, vector<16x128xbf16>,
    %13 = vector.extract_strided_slice %10 {offsets = [16, 0], sizes = [16, 128], strides = [1, 1]} : vector<32x128xbf16> to vector<16x128xbf16>
    %c32 = arith.constant 32 : index
    %c0_9 = arith.constant 0 : index
    %14 = vector.load %arg19[%c32, %c0_9] : memref<48x128xbf16, #tpu.memory_space<vmem>>, vector<16x128xbf16>
    tpu.vector_store %arg19[%c32, %c0_9], %13 {strides = array<i32>} : memref<48x128xbf16, #tpu.memory_space<vmem>>, vector<16x128xbf16>,
    %c7 = arith.constant 7 : index
    %c0_10 = arith.constant 0 : index
    %15 = vector.load %arg19[%c7, %c0_10] : memref<48x128xbf16, #tpu.memory_space<vmem>>, vector<16x128xbf16>
    %c31 = arith.constant 31 : index
    %c0_11 = arith.constant 0 : index
    %16 = vector.load %arg19[%c31, %c0_11] : memref<48x128xbf16, #tpu.memory_space<vmem>>, vector<16x128xbf16>
    %17 = tpu.concatenate %15, %16 in 0 : vector<16x128xbf16>, vector<16x128xbf16> -> vector<32x128xbf16>
    %c0_12 = arith.constant 0 : index
    %c0_13 = arith.constant 0 : index
    %c0_14 = arith.constant 0 : index
    %18 = vector.load %arg2[%c0_12, %c0_13, %c0_14] : memref<2x128x128xbf16, #tpu.memory_space<vmem>>, vector<1x128x128xbf16>
    %19 = vector.shape_cast %18 : vector<1x128x128xbf16> to vector<128x128xbf16>
    %cst_15 = arith.constant dense<0.000000e+00> : vector<32x128xf32>
    %20 = tpu.matmul %17, %19, %cst_15 {dimension_numbers = #tpu.dot_dimension_numbers<[1], [0], [0], [1], [0, 0, 1, 1], [], []>} : vector<32x128xbf16>, vector<128x128xbf16>, vector<32x128xf32> -> vector<32x128xf32>
    %c8_16 = arith.constant 8 : index
    %c0_17 = arith.constant 0 : index
    %21 = vector.load %arg19[%c8_16, %c0_17] : memref<48x128xbf16, #tpu.memory_space<vmem>>, vector<16x128xbf16>
    %c32_18 = arith.constant 32 : index
    %c0_19 = arith.constant 0 : index
    %22 = vector.load %arg19[%c32_18, %c0_19] : memref<48x128xbf16, #tpu.memory_space<vmem>>, vector<16x128xbf16>
    %23 = tpu.concatenate %21, %22 in 0 : vector<16x128xbf16>, vector<16x128xbf16> -> vector<32x128xbf16>
    %c1_20 = arith.constant 1 : index
    %c0_21 = arith.constant 0 : index
    %c0_22 = arith.constant 0 : index
    %24 = vector.load %arg2[%c1_20, %c0_21, %c0_22] : memref<2x128x128xbf16, #tpu.memory_space<vmem>>, vector<1x128x128xbf16>
    %25 = vector.shape_cast %24 : vector<1x128x128xbf16> to vector<128x128xbf16>
    %cst_23 = arith.constant dense<0.000000e+00> : vector<32x128xf32>
    %26 = tpu.matmul %23, %25, %cst_23 {dimension_numbers = #tpu.dot_dimension_numbers<[1], [0], [0], [1], [0, 0, 1, 1], [], []>} : vector<32x128xbf16>, vector<128x128xbf16>, vector<32x128xf32> -> vector<32x128xf32>
    %27 = arith.addf %20, %26 : vector<32x128xf32>
    %c0_24 = arith.constant 0 : index
    %c0_25 = arith.constant 0 : index
    %28 = vector.load %arg3[%c0_24, %c0_25] : memref<1x128xf32, #tpu.memory_space<vmem>>, vector<1x128xf32>
    %29 = vector.broadcast %28 : vector<1x128xf32> to vector<32x128xf32>
    %30 = arith.addf %27, %29 : vector<32x128xf32>
    %cst_26 = arith.constant 0.000000e+00 : f32
    %31 = vector.broadcast %cst_26 : f32 to vector<32x128xf32>
    %32 = arith.maximumf %30, %31 : vector<32x128xf32>
    %33 = arith.truncf %32 : vector<32x128xf32> to vector<32x128xbf16>
    %34 = vector.extract_strided_slice %33 {offsets = [0, 0], sizes = [16, 128], strides = [1, 1]} : vector<32x128xbf16> to vector<16x128xbf16>
    %c8_27 = arith.constant 8 : index
    %c0_28 = arith.constant 0 : index
    %35 = vector.load %arg19[%c8_27, %c0_28] : memref<48x128xbf16, #tpu.memory_space<vmem>>, vector<16x128xbf16>
    tpu.vector_store %arg19[%c8_27, %c0_28], %34 {strides = array<i32>} : memref<48x128xbf16, #tpu.memory_space<vmem>>, vector<16x128xbf16>,
    %36 = vector.extract_strided_slice %33 {offsets = [16, 0], sizes = [16, 128], strides = [1, 1]} : vector<32x128xbf16> to vector<16x128xbf16>
    %c32_29 = arith.constant 32 : index
    %c0_30 = arith.constant 0 : index
    %37 = vector.load %arg19[%c32_29, %c0_30] : memref<48x128xbf16, #tpu.memory_space<vmem>>, vector<16x128xbf16>
    tpu.vector_store %arg19[%c32_29, %c0_30], %36 {strides = array<i32>} : memref<48x128xbf16, #tpu.memory_space<vmem>>, vector<16x128xbf16>,
    %c7_31 = arith.constant 7 : index
    %c0_32 = arith.constant 0 : index
    %38 = vector.load %arg19[%c7_31, %c0_32] : memref<48x128xbf16, #tpu.memory_space<vmem>>, vector<16x128xbf16>
    %c31_33 = arith.constant 31 : index
    %c0_34 = arith.constant 0 : index
    %39 = vector.load %arg19[%c31_33, %c0_34] : memref<48x128xbf16, #tpu.memory_space<vmem>>, vector<16x128xbf16>
    %40 = tpu.concatenate %38, %39 in 0 : vector<16x128xbf16>, vector<16x128xbf16> -> vector<32x128xbf16>
    %c0_35 = arith.constant 0 : index
    %c0_36 = arith.constant 0 : index
    %c0_37 = arith.constant 0 : index
    %41 = vector.load %arg4[%c0_35, %c0_36, %c0_37] : memref<2x128x128xbf16, #tpu.memory_space<vmem>>, vector<1x128x128xbf16>
    %42 = vector.shape_cast %41 : vector<1x128x128xbf16> to vector<128x128xbf16>
    %cst_38 = arith.constant dense<0.000000e+00> : vector<32x128xf32>
    %43 = tpu.matmul %40, %42, %cst_38 {dimension_numbers = #tpu.dot_dimension_numbers<[1], [0], [0], [1], [0, 0, 1, 1], [], []>} : vector<32x128xbf16>, vector<128x128xbf16>, vector<32x128xf32> -> vector<32x128xf32>
    %c8_39 = arith.constant 8 : index
    %c0_40 = arith.constant 0 : index
    %44 = vector.load %arg19[%c8_39, %c0_40] : memref<48x128xbf16, #tpu.memory_space<vmem>>, vector<16x128xbf16>
    %c32_41 = arith.constant 32 : index
    %c0_42 = arith.constant 0 : index
    %45 = vector.load %arg19[%c32_41, %c0_42] : memref<48x128xbf16, #tpu.memory_space<vmem>>, vector<16x128xbf16>
    %46 = tpu.concatenate %44, %45 in 0 : vector<16x128xbf16>, vector<16x128xbf16> -> vector<32x128xbf16>
    %c1_43 = arith.constant 1 : index
    %c0_44 = arith.constant 0 : index
    %c0_45 = arith.constant 0 : index
    %47 = vector.load %arg4[%c1_43, %c0_44, %c0_45] : memref<2x128x128xbf16, #tpu.memory_space<vmem>>, vector<1x128x128xbf16>
    %48 = vector.shape_cast %47 : vector<1x128x128xbf16> to vector<128x128xbf16>
    %cst_46 = arith.constant dense<0.000000e+00> : vector<32x128xf32>
    %49 = tpu.matmul %46, %48, %cst_46 {dimension_numbers = #tpu.dot_dimension_numbers<[1], [0], [0], [1], [0, 0, 1, 1], [], []>} : vector<32x128xbf16>, vector<128x128xbf16>, vector<32x128xf32> -> vector<32x128xf32>
    %50 = arith.addf %43, %49 : vector<32x128xf32>
    %c0_47 = arith.constant 0 : index
    %c0_48 = arith.constant 0 : index
    %51 = vector.load %arg5[%c0_47, %c0_48] : memref<1x128xf32, #tpu.memory_space<vmem>>, vector<1x128xf32>
    %52 = vector.broadcast %51 : vector<1x128xf32> to vector<32x128xf32>
    %53 = arith.addf %50, %52 : vector<32x128xf32>
    %cst_49 = arith.constant 0.000000e+00 : f32
    %54 = vector.broadcast %cst_49 : f32 to vector<32x128xf32>
    %55 = arith.maximumf %53, %54 : vector<32x128xf32>
    %56 = arith.truncf %9 : vector<32x128xf32> to vector<32x128xbf16>
    %c0_50 = arith.constant 0 : index
    %c0_51 = arith.constant 0 : index
    %57 = vector.load %arg6[%c0_50, %c0_51] : memref<128x128xbf16, #tpu.memory_space<vmem>>, vector<128x128xbf16>
    %cst_52 = arith.constant dense<0.000000e+00> : vector<32x128xf32>
    %58 = tpu.matmul %56, %57, %cst_52 {dimension_numbers = #tpu.dot_dimension_numbers<[1], [0], [0], [1], [0, 0, 1, 1], [], []>} : vector<32x128xbf16>, vector<128x128xbf16>, vector<32x128xf32> -> vector<32x128xf32>
    %c0_53 = arith.constant 0 : index
    %c0_54 = arith.constant 0 : index
    %59 = vector.load %arg7[%c0_53, %c0_54] : memref<1x128xf32, #tpu.memory_space<vmem>>, vector<1x128xf32>
    %60 = vector.broadcast %59 : vector<1x128xf32> to vector<32x128xf32>
    %61 = arith.addf %58, %60 : vector<32x128xf32>
    %62 = arith.addf %55, %61 : vector<32x128xf32>
    %cst_55 = arith.constant 0.000000e+00 : f32
    %63 = vector.broadcast %cst_55 : f32 to vector<32x128xf32>
    %64 = arith.maximumf %62, %63 : vector<32x128xf32>
    %65 = arith.truncf %64 : vector<32x128xf32> to vector<32x128xbf16>
    %66 = vector.extract_strided_slice %65 {offsets = [0, 0], sizes = [16, 128], strides = [1, 1]} : vector<32x128xbf16> to vector<16x128xbf16>
    %c8_56 = arith.constant 8 : index
    %c0_57 = arith.constant 0 : index
    %67 = vector.load %arg19[%c8_56, %c0_57] : memref<48x128xbf16, #tpu.memory_space<vmem>>, vector<16x128xbf16>
    tpu.vector_store %arg19[%c8_56, %c0_57], %66 {strides = array<i32>} : memref<48x128xbf16, #tpu.memory_space<vmem>>, vector<16x128xbf16>,
    %68 = vector.extract_strided_slice %65 {offsets = [16, 0], sizes = [16, 128], strides = [1, 1]} : vector<32x128xbf16> to vector<16x128xbf16>
    %c32_58 = arith.constant 32 : index
    %c0_59 = arith.constant 0 : index
    %69 = vector.load %arg19[%c32_58, %c0_59] : memref<48x128xbf16, #tpu.memory_space<vmem>>, vector<16x128xbf16>
    tpu.vector_store %arg19[%c32_58, %c0_59], %68 {strides = array<i32>} : memref<48x128xbf16, #tpu.memory_space<vmem>>, vector<16x128xbf16>,
    %c6 = arith.constant 6 : index
    %c0_60 = arith.constant 0 : index
    %70 = vector.load %arg19[%c6, %c0_60] : memref<48x128xbf16, #tpu.memory_space<vmem>>, vector<16x128xbf16>
    %c30 = arith.constant 30 : index
    %c0_61 = arith.constant 0 : index
    %71 = vector.load %arg19[%c30, %c0_61] : memref<48x128xbf16, #tpu.memory_space<vmem>>, vector<16x128xbf16>
    %72 = tpu.concatenate %70, %71 in 0 : vector<16x128xbf16>, vector<16x128xbf16> -> vector<32x128xbf16>
    %c0_62 = arith.constant 0 : index
    %c0_63 = arith.constant 0 : index
    %c0_64 = arith.constant 0 : index
    %73 = vector.load %arg8[%c0_62, %c0_63, %c0_64] : memref<2x128x128xbf16, #tpu.memory_space<vmem>>, vector<1x128x128xbf16>
    %74 = vector.shape_cast %73 : vector<1x128x128xbf16> to vector<128x128xbf16>
    %cst_65 = arith.constant dense<0.000000e+00> : vector<32x128xf32>
    %75 = tpu.matmul %72, %74, %cst_65 {dimension_numbers = #tpu.dot_dimension_numbers<[1], [0], [0], [1], [0, 0, 1, 1], [], []>} : vector<32x128xbf16>, vector<128x128xbf16>, vector<32x128xf32> -> vector<32x128xf32>
    %c8_66 = arith.constant 8 : index
    %c0_67 = arith.constant 0 : index
    %76 = vector.load %arg19[%c8_66, %c0_67] : memref<48x128xbf16, #tpu.memory_space<vmem>>, vector<16x128xbf16>
    %c32_68 = arith.constant 32 : index
    %c0_69 = arith.constant 0 : index
    %77 = vector.load %arg19[%c32_68, %c0_69] : memref<48x128xbf16, #tpu.memory_space<vmem>>, vector<16x128xbf16>
    %78 = tpu.concatenate %76, %77 in 0 : vector<16x128xbf16>, vector<16x128xbf16> -> vector<32x128xbf16>
    %c1_70 = arith.constant 1 : index
    %c0_71 = arith.constant 0 : index
    %c0_72 = arith.constant 0 : index
    %79 = vector.load %arg8[%c1_70, %c0_71, %c0_72] : memref<2x128x128xbf16, #tpu.memory_space<vmem>>, vector<1x128x128xbf16>
    %80 = vector.shape_cast %79 : vector<1x128x128xbf16> to vector<128x128xbf16>
    %cst_73 = arith.constant dense<0.000000e+00> : vector<32x128xf32>
    %81 = tpu.matmul %78, %80, %cst_73 {dimension_numbers = #tpu.dot_dimension_numbers<[1], [0], [0], [1], [0, 0, 1, 1], [], []>} : vector<32x128xbf16>, vector<128x128xbf16>, vector<32x128xf32> -> vector<32x128xf32>
    %82 = arith.addf %75, %81 : vector<32x128xf32>
    %c0_74 = arith.constant 0 : index
    %c0_75 = arith.constant 0 : index
    %83 = vector.load %arg9[%c0_74, %c0_75] : memref<1x128xf32, #tpu.memory_space<vmem>>, vector<1x128xf32>
    %84 = vector.broadcast %83 : vector<1x128xf32> to vector<32x128xf32>
    %85 = arith.addf %82, %84 : vector<32x128xf32>
    %cst_76 = arith.constant 0.000000e+00 : f32
    %86 = vector.broadcast %cst_76 : f32 to vector<32x128xf32>
    %87 = arith.maximumf %85, %86 : vector<32x128xf32>
    %88 = arith.truncf %87 : vector<32x128xf32> to vector<32x128xbf16>
    %89 = vector.extract_strided_slice %88 {offsets = [0, 0], sizes = [16, 128], strides = [1, 1]} : vector<32x128xbf16> to vector<16x128xbf16>
    %c8_77 = arith.constant 8 : index
    %c0_78 = arith.constant 0 : index
    %90 = vector.load %arg19[%c8_77, %c0_78] : memref<48x128xbf16, #tpu.memory_space<vmem>>, vector<16x128xbf16>
    tpu.vector_store %arg19[%c8_77, %c0_78], %89 {strides = array<i32>} : memref<48x128xbf16, #tpu.memory_space<vmem>>, vector<16x128xbf16>,
    %91 = vector.extract_strided_slice %88 {offsets = [16, 0], sizes = [16, 128], strides = [1, 1]} : vector<32x128xbf16> to vector<16x128xbf16>
    %c32_79 = arith.constant 32 : index
    %c0_80 = arith.constant 0 : index
    %92 = vector.load %arg19[%c32_79, %c0_80] : memref<48x128xbf16, #tpu.memory_space<vmem>>, vector<16x128xbf16>
    tpu.vector_store %arg19[%c32_79, %c0_80], %91 {strides = array<i32>} : memref<48x128xbf16, #tpu.memory_space<vmem>>, vector<16x128xbf16>,
    %c6_81 = arith.constant 6 : index
    %c0_82 = arith.constant 0 : index
    %93 = vector.load %arg19[%c6_81, %c0_82] : memref<48x128xbf16, #tpu.memory_space<vmem>>, vector<16x128xbf16>
    %c30_83 = arith.constant 30 : index
    %c0_84 = arith.constant 0 : index
    %94 = vector.load %arg19[%c30_83, %c0_84] : memref<48x128xbf16, #tpu.memory_space<vmem>>, vector<16x128xbf16>
    %95 = tpu.concatenate %93, %94 in 0 : vector<16x128xbf16>, vector<16x128xbf16> -> vector<32x128xbf16>
    %c0_85 = arith.constant 0 : index
    %c0_86 = arith.constant 0 : index
    %c0_87 = arith.constant 0 : index
    %96 = vector.load %arg10[%c0_85, %c0_86, %c0_87] : memref<2x128x128xbf16, #tpu.memory_space<vmem>>, vector<1x128x128xbf16>
    %97 = vector.shape_cast %96 : vector<1x128x128xbf16> to vector<128x128xbf16>
    %cst_88 = arith.constant dense<0.000000e+00> : vector<32x128xf32>
    %98 = tpu.matmul %95, %97, %cst_88 {dimension_numbers = #tpu.dot_dimension_numbers<[1], [0], [0], [1], [0, 0, 1, 1], [], []>} : vector<32x128xbf16>, vector<128x128xbf16>, vector<32x128xf32> -> vector<32x128xf32>
    %c8_89 = arith.constant 8 : index
    %c0_90 = arith.constant 0 : index
    %99 = vector.load %arg19[%c8_89, %c0_90] : memref<48x128xbf16, #tpu.memory_space<vmem>>, vector<16x128xbf16>
    %c32_91 = arith.constant 32 : index
    %c0_92 = arith.constant 0 : index
    %100 = vector.load %arg19[%c32_91, %c0_92] : memref<48x128xbf16, #tpu.memory_space<vmem>>, vector<16x128xbf16>
    %101 = tpu.concatenate %99, %100 in 0 : vector<16x128xbf16>, vector<16x128xbf16> -> vector<32x128xbf16>
    %c1_93 = arith.constant 1 : index
    %c0_94 = arith.constant 0 : index
    %c0_95 = arith.constant 0 : index
    %102 = vector.load %arg10[%c1_93, %c0_94, %c0_95] : memref<2x128x128xbf16, #tpu.memory_space<vmem>>, vector<1x128x128xbf16>
    %103 = vector.shape_cast %102 : vector<1x128x128xbf16> to vector<128x128xbf16>
    %cst_96 = arith.constant dense<0.000000e+00> : vector<32x128xf32>
    %104 = tpu.matmul %101, %103, %cst_96 {dimension_numbers = #tpu.dot_dimension_numbers<[1], [0], [0], [1], [0, 0, 1, 1], [], []>} : vector<32x128xbf16>, vector<128x128xbf16>, vector<32x128xf32> -> vector<32x128xf32>
    %105 = arith.addf %98, %104 : vector<32x128xf32>
    %c0_97 = arith.constant 0 : index
    %c0_98 = arith.constant 0 : index
    %106 = vector.load %arg11[%c0_97, %c0_98] : memref<1x128xf32, #tpu.memory_space<vmem>>, vector<1x128xf32>
    %107 = vector.broadcast %106 : vector<1x128xf32> to vector<32x128xf32>
    %108 = arith.addf %105, %107 : vector<32x128xf32>
    %cst_99 = arith.constant 0.000000e+00 : f32
    %109 = vector.broadcast %cst_99 : f32 to vector<32x128xf32>
    %110 = arith.maximumf %108, %109 : vector<32x128xf32>
    %111 = arith.addf %110, %64 : vector<32x128xf32>
    %cst_100 = arith.constant 0.000000e+00 : f32
    %112 = vector.broadcast %cst_100 : f32 to vector<32x128xf32>
    %113 = arith.maximumf %111, %112 : vector<32x128xf32>
    %114 = arith.truncf %113 : vector<32x128xf32> to vector<32x128xbf16>
    %115 = vector.extract_strided_slice %114 {offsets = [0, 0], sizes = [16, 128], strides = [1, 1]} : vector<32x128xbf16> to vector<16x128xbf16>
    %c8_101 = arith.constant 8 : index
    %c0_102 = arith.constant 0 : index
    %116 = vector.load %arg19[%c8_101, %c0_102] : memref<48x128xbf16, #tpu.memory_space<vmem>>, vector<16x128xbf16>
    tpu.vector_store %arg19[%c8_101, %c0_102], %115 {strides = array<i32>} : memref<48x128xbf16, #tpu.memory_space<vmem>>, vector<16x128xbf16>,
    %117 = vector.extract_strided_slice %114 {offsets = [16, 0], sizes = [16, 128], strides = [1, 1]} : vector<32x128xbf16> to vector<16x128xbf16>
    %c32_103 = arith.constant 32 : index
    %c0_104 = arith.constant 0 : index
    %118 = vector.load %arg19[%c32_103, %c0_104] : memref<48x128xbf16, #tpu.memory_space<vmem>>, vector<16x128xbf16>
    tpu.vector_store %arg19[%c32_103, %c0_104], %117 {strides = array<i32>} : memref<48x128xbf16, #tpu.memory_space<vmem>>, vector<16x128xbf16>,
    %c4 = arith.constant 4 : index
    %c0_105 = arith.constant 0 : index
    %119 = vector.load %arg19[%c4, %c0_105] : memref<48x128xbf16, #tpu.memory_space<vmem>>, vector<16x128xbf16>
    %c28 = arith.constant 28 : index
    %c0_106 = arith.constant 0 : index
    %120 = vector.load %arg19[%c28, %c0_106] : memref<48x128xbf16, #tpu.memory_space<vmem>>, vector<16x128xbf16>
    %121 = tpu.concatenate %119, %120 in 0 : vector<16x128xbf16>, vector<16x128xbf16> -> vector<32x128xbf16>
    %c0_107 = arith.constant 0 : index
    %c0_108 = arith.constant 0 : index
    %c0_109 = arith.constant 0 : index
    %122 = vector.load %arg12[%c0_107, %c0_108, %c0_109] : memref<2x128x128xbf16, #tpu.memory_space<vmem>>, vector<1x128x128xbf16>
    %123 = vector.shape_cast %122 : vector<1x128x128xbf16> to vector<128x128xbf16>
    %cst_110 = arith.constant dense<0.000000e+00> : vector<32x128xf32>
    %124 = tpu.matmul %121, %123, %cst_110 {dimension_numbers = #tpu.dot_dimension_numbers<[1], [0], [0], [1], [0, 0, 1, 1], [], []>} : vector<32x128xbf16>, vector<128x128xbf16>, vector<32x128xf32> -> vector<32x128xf32>
    %c8_111 = arith.constant 8 : index
    %c0_112 = arith.constant 0 : index
    %125 = vector.load %arg19[%c8_111, %c0_112] : memref<48x128xbf16, #tpu.memory_space<vmem>>, vector<16x128xbf16>
    %c32_113 = arith.constant 32 : index
    %c0_114 = arith.constant 0 : index
    %126 = vector.load %arg19[%c32_113, %c0_114] : memref<48x128xbf16, #tpu.memory_space<vmem>>, vector<16x128xbf16>
    %127 = tpu.concatenate %125, %126 in 0 : vector<16x128xbf16>, vector<16x128xbf16> -> vector<32x128xbf16>
    %c1_115 = arith.constant 1 : index
    %c0_116 = arith.constant 0 : index
    %c0_117 = arith.constant 0 : index
    %128 = vector.load %arg12[%c1_115, %c0_116, %c0_117] : memref<2x128x128xbf16, #tpu.memory_space<vmem>>, vector<1x128x128xbf16>
    %129 = vector.shape_cast %128 : vector<1x128x128xbf16> to vector<128x128xbf16>
    %cst_118 = arith.constant dense<0.000000e+00> : vector<32x128xf32>
    %130 = tpu.matmul %127, %129, %cst_118 {dimension_numbers = #tpu.dot_dimension_numbers<[1], [0], [0], [1], [0, 0, 1, 1], [], []>} : vector<32x128xbf16>, vector<128x128xbf16>, vector<32x128xf32> -> vector<32x128xf32>
    %131 = arith.addf %124, %130 : vector<32x128xf32>
    %c0_119 = arith.constant 0 : index
    %c0_120 = arith.constant 0 : index
    %132 = vector.load %arg13[%c0_119, %c0_120] : memref<1x128xf32, #tpu.memory_space<vmem>>, vector<1x128xf32>
    %133 = vector.broadcast %132 : vector<1x128xf32> to vector<32x128xf32>
    %134 = arith.addf %131, %133 : vector<32x128xf32>
    %cst_121 = arith.constant 0.000000e+00 : f32
    %135 = vector.broadcast %cst_121 : f32 to vector<32x128xf32>
    %136 = arith.maximumf %134, %135 : vector<32x128xf32>
    %137 = arith.truncf %136 : vector<32x128xf32> to vector<32x128xbf16>
    %138 = vector.extract_strided_slice %137 {offsets = [0, 0], sizes = [16, 128], strides = [1, 1]} : vector<32x128xbf16> to vector<16x128xbf16>
    %c8_122 = arith.constant 8 : index
    %c0_123 = arith.constant 0 : index
    %139 = vector.load %arg19[%c8_122, %c0_123] : memref<48x128xbf16, #tpu.memory_space<vmem>>, vector<16x128xbf16>
    tpu.vector_store %arg19[%c8_122, %c0_123], %138 {strides = array<i32>} : memref<48x128xbf16, #tpu.memory_space<vmem>>, vector<16x128xbf16>,
    %140 = vector.extract_strided_slice %137 {offsets = [16, 0], sizes = [16, 128], strides = [1, 1]} : vector<32x128xbf16> to vector<16x128xbf16>
    %c32_124 = arith.constant 32 : index
    %c0_125 = arith.constant 0 : index
    %141 = vector.load %arg19[%c32_124, %c0_125] : memref<48x128xbf16, #tpu.memory_space<vmem>>, vector<16x128xbf16>
    tpu.vector_store %arg19[%c32_124, %c0_125], %140 {strides = array<i32>} : memref<48x128xbf16, #tpu.memory_space<vmem>>, vector<16x128xbf16>,
    %c4_126 = arith.constant 4 : index
    %c0_127 = arith.constant 0 : index
    %142 = vector.load %arg19[%c4_126, %c0_127] : memref<48x128xbf16, #tpu.memory_space<vmem>>, vector<16x128xbf16>
    %c28_128 = arith.constant 28 : index
    %c0_129 = arith.constant 0 : index
    %143 = vector.load %arg19[%c28_128, %c0_129] : memref<48x128xbf16, #tpu.memory_space<vmem>>, vector<16x128xbf16>
    %144 = tpu.concatenate %142, %143 in 0 : vector<16x128xbf16>, vector<16x128xbf16> -> vector<32x128xbf16>
    %c0_130 = arith.constant 0 : index
    %c0_131 = arith.constant 0 : index
    %c0_132 = arith.constant 0 : index
    %145 = vector.load %arg14[%c0_130, %c0_131, %c0_132] : memref<2x128x128xbf16, #tpu.memory_space<vmem>>, vector<1x128x128xbf16>
    %146 = vector.shape_cast %145 : vector<1x128x128xbf16> to vector<128x128xbf16>
    %cst_133 = arith.constant dense<0.000000e+00> : vector<32x128xf32>
    %147 = tpu.matmul %144, %146, %cst_133 {dimension_numbers = #tpu.dot_dimension_numbers<[1], [0], [0], [1], [0, 0, 1, 1], [], []>} : vector<32x128xbf16>, vector<128x128xbf16>, vector<32x128xf32> -> vector<32x128xf32>
    %c8_134 = arith.constant 8 : index
    %c0_135 = arith.constant 0 : index
    %148 = vector.load %arg19[%c8_134, %c0_135] : memref<48x128xbf16, #tpu.memory_space<vmem>>, vector<16x128xbf16>
    %c32_136 = arith.constant 32 : index
    %c0_137 = arith.constant 0 : index
    %149 = vector.load %arg19[%c32_136, %c0_137] : memref<48x128xbf16, #tpu.memory_space<vmem>>, vector<16x128xbf16>
    %150 = tpu.concatenate %148, %149 in 0 : vector<16x128xbf16>, vector<16x128xbf16> -> vector<32x128xbf16>
    %c1_138 = arith.constant 1 : index
    %c0_139 = arith.constant 0 : index
    %c0_140 = arith.constant 0 : index
    %151 = vector.load %arg14[%c1_138, %c0_139, %c0_140] : memref<2x128x128xbf16, #tpu.memory_space<vmem>>, vector<1x128x128xbf16>
    %152 = vector.shape_cast %151 : vector<1x128x128xbf16> to vector<128x128xbf16>
    %cst_141 = arith.constant dense<0.000000e+00> : vector<32x128xf32>
    %153 = tpu.matmul %150, %152, %cst_141 {dimension_numbers = #tpu.dot_dimension_numbers<[1], [0], [0], [1], [0, 0, 1, 1], [], []>} : vector<32x128xbf16>, vector<128x128xbf16>, vector<32x128xf32> -> vector<32x128xf32>
    %154 = arith.addf %147, %153 : vector<32x128xf32>
    %c0_142 = arith.constant 0 : index
    %c0_143 = arith.constant 0 : index
    %155 = vector.load %arg15[%c0_142, %c0_143] : memref<1x128xf32, #tpu.memory_space<vmem>>, vector<1x128xf32>
    %156 = vector.broadcast %155 : vector<1x128xf32> to vector<32x128xf32>
    %157 = arith.addf %154, %156 : vector<32x128xf32>
    %cst_144 = arith.constant 0.000000e+00 : f32
    %158 = vector.broadcast %cst_144 : f32 to vector<32x128xf32>
    %159 = arith.maximumf %157, %158 : vector<32x128xf32>
    %160 = arith.truncf %113 : vector<32x128xf32> to vector<32x128xbf16>
    %c0_145 = arith.constant 0 : index
    %c0_146 = arith.constant 0 : index
    %161 = vector.load %arg16[%c0_145, %c0_146] : memref<128x128xbf16, #tpu.memory_space<vmem>>, vector<128x128xbf16>
    %cst_147 = arith.constant dense<0.000000e+00> : vector<32x128xf32>
    %162 = tpu.matmul %160, %161, %cst_147 {dimension_numbers = #tpu.dot_dimension_numbers<[1], [0], [0], [1], [0, 0, 1, 1], [], []>} : vector<32x128xbf16>, vector<128x128xbf16>, vector<32x128xf32> -> vector<32x128xf32>
    %c0_148 = arith.constant 0 : index
    %c0_149 = arith.constant 0 : index
    %163 = vector.load %arg17[%c0_148, %c0_149] : memref<1x128xf32, #tpu.memory_space<vmem>>, vector<1x128xf32>
    %164 = vector.broadcast %163 : vector<1x128xf32> to vector<32x128xf32>
    %165 = arith.addf %162, %164 : vector<32x128xf32>
    %166 = arith.addf %159, %165 : vector<32x128xf32>
    %cst_150 = arith.constant 0.000000e+00 : f32
    %167 = vector.broadcast %cst_150 : f32 to vector<32x128xf32>
    %168 = arith.maximumf %166, %167 : vector<32x128xf32>
    %169 = vector.extract_strided_slice %168 {offsets = [0, 0], sizes = [16, 128], strides = [1, 1]} : vector<32x128xf32> to vector<16x128xf32>
    %c0_151 = arith.constant 0 : index
    %c0_152 = arith.constant 0 : index
    %c0_153 = arith.constant 0 : index
    %170 = vector.load %arg18[%c0_151, %c0_152, %c0_153] : memref<2x16x128xf32, #tpu.memory_space<vmem>>, vector<1x16x128xf32>
    %171 = vector.shape_cast %170 : vector<1x16x128xf32> to vector<16x128xf32>
    %172 = vector.shape_cast %169 : vector<16x128xf32> to vector<1x16x128xf32>
    tpu.vector_store %arg18[%c0_151, %c0_152, %c0_153], %172 {strides = array<i32>} : memref<2x16x128xf32, #tpu.memory_space<vmem>>, vector<1x16x128xf32>,
    %173 = vector.extract_strided_slice %168 {offsets = [16, 0], sizes = [16, 128], strides = [1, 1]} : vector<32x128xf32> to vector<16x128xf32>
    %c1_154 = arith.constant 1 : index
    %c0_155 = arith.constant 0 : index
    %c0_156 = arith.constant 0 : index
    %174 = vector.load %arg18[%c1_154, %c0_155, %c0_156] : memref<2x16x128xf32, #tpu.memory_space<vmem>>, vector<1x16x128xf32>
    %175 = vector.shape_cast %174 : vector<1x16x128xf32> to vector<16x128xf32>
    %176 = vector.shape_cast %173 : vector<16x128xf32> to vector<1x16x128xf32>
    tpu.vector_store %arg18[%c1_154, %c0_155, %c0_156], %176 {strides = array<i32>} : memref<2x16x128xf32, #tpu.memory_space<vmem>>, vector<1x16x128xf32>,
    return
  }
  func.func @transform_0(%arg0: i32) -> (i32, i32, i32) {
    %c0_i32 = arith.constant 0 : i32
    %c0_i32_0 = arith.constant 0 : i32
    %c0_i32_1 = arith.constant 0 : i32
    return %arg0, %c0_i32, %c0_i32_0 : i32, i32, i32
  }
  func.func @transform_1(%arg0: i32) -> (i32, i32, i32) {
    %c0_i32 = arith.constant 0 : i32
    %c0_i32_0 = arith.constant 0 : i32
    %c0_i32_1 = arith.constant 0 : i32
    %c0_i32_2 = arith.constant 0 : i32
    return %c0_i32, %c0_i32_0, %c0_i32_1 : i32, i32, i32
  }
  func.func @transform_2(%arg0: i32) -> (i32, i32) {
    %c0_i32 = arith.constant 0 : i32
    %c0_i32_0 = arith.constant 0 : i32
    %c0_i32_1 = arith.constant 0 : i32
    return %c0_i32, %c0_i32_0 : i32, i32
  }
  func.func @transform_3(%arg0: i32) -> (i32, i32, i32) {
    %c0_i32 = arith.constant 0 : i32
    %c0_i32_0 = arith.constant 0 : i32
    %c0_i32_1 = arith.constant 0 : i32
    %c0_i32_2 = arith.constant 0 : i32
    return %c0_i32, %c0_i32_0, %c0_i32_1 : i32, i32, i32
  }
  func.func @transform_4(%arg0: i32) -> (i32, i32) {
    %c0_i32 = arith.constant 0 : i32
    %c0_i32_0 = arith.constant 0 : i32
    %c0_i32_1 = arith.constant 0 : i32
    return %c0_i32, %c0_i32_0 : i32, i32
  }
  func.func @transform_5(%arg0: i32) -> (i32, i32) {
    %c0_i32 = arith.constant 0 : i32
    %c0_i32_0 = arith.constant 0 : i32
    %c0_i32_1 = arith.constant 0 : i32
    return %c0_i32, %c0_i32_0 : i32, i32
  }
  func.func @transform_6(%arg0: i32) -> (i32, i32) {
    %c0_i32 = arith.constant 0 : i32
    %c0_i32_0 = arith.constant 0 : i32
    %c0_i32_1 = arith.constant 0 : i32
    return %c0_i32, %c0_i32_0 : i32, i32
  }
  func.func @transform_7(%arg0: i32) -> (i32, i32, i32) {
    %c0_i32 = arith.constant 0 : i32
    %c0_i32_0 = arith.constant 0 : i32
    %c0_i32_1 = arith.constant 0 : i32
    %c0_i32_2 = arith.constant 0 : i32
    return %c0_i32, %c0_i32_0, %c0_i32_1 : i32, i32, i32
  }
  func.func @transform_8(%arg0: i32) -> (i32, i32) {
    %c0_i32 = arith.constant 0 : i32
    %c0_i32_0 = arith.constant 0 : i32
    %c0_i32_1 = arith.constant 0 : i32
    return %c0_i32, %c0_i32_0 : i32, i32
  }
  func.func @transform_9(%arg0: i32) -> (i32, i32, i32) {
    %c0_i32 = arith.constant 0 : i32
    %c0_i32_0 = arith.constant 0 : i32
    %c0_i32_1 = arith.constant 0 : i32
    %c0_i32_2 = arith.constant 0 : i32
    return %c0_i32, %c0_i32_0, %c0_i32_1 : i32, i32, i32
  }
  func.func @transform_10(%arg0: i32) -> (i32, i32) {
    %c0_i32 = arith.constant 0 : i32
    %c0_i32_0 = arith.constant 0 : i32
    %c0_i32_1 = arith.constant 0 : i32
    return %c0_i32, %c0_i32_0 : i32, i32
  }
  func.func @transform_11(%arg0: i32) -> (i32, i32, i32) {
    %c0_i32 = arith.constant 0 : i32
    %c0_i32_0 = arith.constant 0 : i32
    %c0_i32_1 = arith.constant 0 : i32
    %c0_i32_2 = arith.constant 0 : i32
    return %c0_i32, %c0_i32_0, %c0_i32_1 : i32, i32, i32
  }
  func.func @transform_12(%arg0: i32) -> (i32, i32) {
    %c0_i32 = arith.constant 0 : i32
    %c0_i32_0 = arith.constant 0 : i32
    %c0_i32_1 = arith.constant 0 : i32
    return %c0_i32, %c0_i32_0 : i32, i32
  }
  func.func @transform_13(%arg0: i32) -> (i32, i32, i32) {
    %c0_i32 = arith.constant 0 : i32
    %c0_i32_0 = arith.constant 0 : i32
    %c0_i32_1 = arith.constant 0 : i32
    %c0_i32_2 = arith.constant 0 : i32
    return %c0_i32, %c0_i32_0, %c0_i32_1 : i32, i32, i32
  }
  func.func @transform_14(%arg0: i32) -> (i32, i32) {
    %c0_i32 = arith.constant 0 : i32
    %c0_i32_0 = arith.constant 0 : i32
    %c0_i32_1 = arith.constant 0 : i32
    return %c0_i32, %c0_i32_0 : i32, i32
  }
  func.func @transform_15(%arg0: i32) -> (i32, i32) {
    %c0_i32 = arith.constant 0 : i32
    %c0_i32_0 = arith.constant 0 : i32
    %c0_i32_1 = arith.constant 0 : i32
    return %c0_i32, %c0_i32_0 : i32, i32
  }
  func.func @transform_16(%arg0: i32) -> (i32, i32) {
    %c0_i32 = arith.constant 0 : i32
    %c0_i32_0 = arith.constant 0 : i32
    %c0_i32_1 = arith.constant 0 : i32
    return %c0_i32, %c0_i32_0 : i32, i32
  }
  func.func @transform_17(%arg0: i32) -> (i32, i32, i32) {
    %c0_i32 = arith.constant 0 : i32
    %c0_i32_0 = arith.constant 0 : i32
    %c0_i32_1 = arith.constant 0 : i32
    return %arg0, %c0_i32, %c0_i32_0 : i32, i32, i32
  }
}

</mosaic_0001>

<llo_original>
// kernel: tpu_custom_call.1
$region0: #{tpu_custom_call.1}
  #allocation0 [shape = 'u32[]', space=smem, size = 0x4, offset = 0x4, fixed_abs, tag = 'smem constant byte address 0x4 - core index']
  #allocation1 [shape = 'u32[72,128]{1,0:T(1,128)}', space=vmem, size = 0x9000, scoped, tag = 'internal scratch']
  #allocation2 [shape = 'bf16[48,128]{1,0:T(8,128)(2,1)}', space=vmem, size = 0x3000, scoped, tag = 'scratch operand']
  %s0 = inlined_call_operand.hbm [shape: bf16[2,16,128], index: 0, kind: input, shape index: {}]
  %s1 = inlined_call_operand.hbm [shape: bf16[2,128,128], index: 1, kind: input, shape index: {}]
  %s2 = inlined_call_operand.vmem [shape: f32[1,128], index: 2, kind: input, shape index: {}]
  %s3 = inlined_call_operand.hbm [shape: bf16[2,128,128], index: 3, kind: input, shape index: {}]
  %s4 = inlined_call_operand.vmem [shape: f32[1,128], index: 4, kind: input, shape index: {}]
  %s5 = inlined_call_operand.hbm [shape: bf16[128,128], index: 5, kind: input, shape index: {}]
  %s6 = inlined_call_operand.vmem [shape: f32[1,128], index: 6, kind: input, shape index: {}]
  %s7 = inlined_call_operand.hbm [shape: bf16[2,128,128], index: 7, kind: input, shape index: {}]
  %s8 = inlined_call_operand.vmem [shape: f32[1,128], index: 8, kind: input, shape index: {}]
  %s9 = inlined_call_operand.hbm [shape: bf16[2,128,128], index: 9, kind: input, shape index: {}]
  %s10 = inlined_call_operand.vmem [shape: f32[1,128], index: 10, kind: input, shape index: {}]
  %s11 = inlined_call_operand.hbm [shape: bf16[2,128,128], index: 11, kind: input, shape index: {}]
  %s12 = inlined_call_operand.vmem [shape: f32[1,128], index: 12, kind: input, shape index: {}]
  %s13 = inlined_call_operand.hbm [shape: bf16[2,128,128], index: 13, kind: input, shape index: {}]
  %s14 = inlined_call_operand.vmem [shape: f32[1,128], index: 14, kind: input, shape index: {}]
  %s15 = inlined_call_operand.hbm [shape: bf16[128,128], index: 15, kind: input, shape index: {}]
  %s16 = inlined_call_operand.vmem [shape: f32[1,128], index: 16, kind: input, shape index: {}]
  %s17 = inlined_call_operand.hbm [shape: f32[2,16,128], index: 17, kind: output, shape index: {}]
  %s18 = sld [smem:[#allocation0]]
  $region114: #{tpu_custom_call.1} parent=0
    _
  %s20 = ssub.s32 1, %s18
  %s21 = scalar_select 0, %s20, %s18
  $region1: #{tpu_custom_call.1} parent=0
    #allocation3 [shape = 'u8[8192]{0}', space=vmem, size = 0x2000, scoped, tag = 'input window, operand 0, single buffered']
    #allocation4 [shape = 's32[1]{0}', space=sflag, size = 0x4, scoped, tag = 'scoped memory for tpu_custom_call.1']
    #allocation5 [shape = 's32[1]{0}', space=sflag, size = 0x4, scoped, tag = 'scoped memory for tpu_custom_call.1']
    #allocation6 [shape = 'u8[65536]{0}', space=vmem, size = 0x10000, scoped, tag = 'input window, operand 1, single buffered']
    #allocation7 [shape = 's32[1]{0}', space=sflag, size = 0x4, scoped, tag = 'scoped memory for tpu_custom_call.1']
    #allocation8 [shape = 'u8[65536]{0}', space=vmem, size = 0x10000, scoped, tag = 'input window, operand 3, single buffered']
    #allocation9 [shape = 'u8[32768]{0}', space=vmem, size = 0x8000, scoped, tag = 'input window, operand 5, single buffered']
    #allocation10 [shape = 's32[1]{0}', space=sflag, size = 0x4, scoped, tag = 'scoped memory for tpu_custom_call.1']
    #allocation11 [shape = 'u8[65536]{0}', space=vmem, size = 0x10000, scoped, tag = 'input window, operand 7, single buffered']
    #allocation12 [shape = 'u8[65536]{0}', space=vmem, size = 0x10000, scoped, tag = 'input window, operand 9, single buffered']
    #allocation13 [shape = 's32[1]{0}', space=sflag, size = 0x4, scoped, tag = 'scoped memory for tpu_custom_call.1']
    #allocation14 [shape = 'u8[65536]{0}', space=vmem, size = 0x10000, scoped, tag = 'input window, operand 11, single buffered']
    #allocation15 [shape = 'u8[65536]{0}', space=vmem, size = 0x10000, scoped, tag = 'input window, operand 13, single buffered']
    #allocation16 [shape = 's32[1]{0}', space=sflag, size = 0x4, scoped, tag = 'scoped memory for tpu_custom_call.1']
    #allocation17 [shape = 'u8[32768]{0}', space=vmem, size = 0x8000, scoped, tag = 'input window, operand 15, single buffered']
    #allocation18 [shape = 'u8[16384]{0}', space=vmem, size = 0x4000, scoped, tag = 'output window, operand 0, single buffered']
    %22 = vsyncpa [#allocation4], 0
    %23 = vsyncpa [#allocation7], 0
    %24 = vsyncpa [#allocation10], 0
    %25 = vsyncpa [#allocation13], 0
    %26 = vsyncpa [#allocation16], 0
    %27 = vsyncpa [#allocation5], 0
    // Predicated region
    $region2: #{tpu_custom_call.1} parent=1 // pred_check
      _
    $region3: #{tpu_custom_call.1} parent=1 // pred_check_branch
      %29 = sbr.rel (0) target = $region5
    $region4: #{tpu_custom_call.1} parent=1 // pred_region
      %31 = vsyncadd [#allocation4], 0
      %s32 = sshll.u32 %s0, 4
      %s33 = int_to_ptr.hbm [resolvable:$true] %s32
      %s34 = sshll.u32 [#allocation3], 4
      %s35 = int_to_ptr.vmem [resolvable:$true] %s34
      %40 = dma.hbm_to_vmem [thread:$0]  %s33, 256, %s35, [#allocation4], 64, 64, 4
    $region5: #{tpu_custom_call.1} parent=1 // pred_fallthru
      _
    // Predicated region
    $region6: #{tpu_custom_call.1} parent=1 // pred_check
      _
    $region7: #{tpu_custom_call.1} parent=1 // pred_check_branch
      %42 = sbr.rel (0) target = $region9
    $region8: #{tpu_custom_call.1} parent=1 // pred_region
      %44 = vsyncadd [#allocation7], 0
      %s45 = sshll.u32 %s1, 4
      %s46 = int_to_ptr.hbm [resolvable:$true] %s45
      %s47 = sshll.u32 [#allocation6], 4
      %s48 = int_to_ptr.vmem [resolvable:$true] %s47
      %53 = dma.hbm_to_vmem [thread:$0]  %s46, 2048, %s48, [#allocation7], 64, 64, 4
    $region9: #{tpu_custom_call.1} parent=1 // pred_fallthru
      _
    // Predicated region
    $region10: #{tpu_custom_call.1} parent=1 // pred_check
      _
    $region11: #{tpu_custom_call.1} parent=1 // pred_check_branch
      %55 = sbr.rel (0) target = $region13
    $region12: #{tpu_custom_call.1} parent=1 // pred_region
      _
    $region13: #{tpu_custom_call.1} parent=1 // pred_fallthru
      _
    // Predicated region
    $region14: #{tpu_custom_call.1} parent=1 // pred_check
      _
    $region15: #{tpu_custom_call.1} parent=1 // pred_check_branch
      %57 = sbr.rel (0) target = $region17
    $region16: #{tpu_custom_call.1} parent=1 // pred_region
      %59 = vsyncadd [#allocation7], 0
      %s60 = sshll.u32 %s3, 4
      %s61 = int_to_ptr.hbm [resolvable:$true] %s60
      %s62 = sshll.u32 [#allocation8], 4
      %s63 = int_to_ptr.vmem [resolvable:$true] %s62
      %68 = dma.hbm_to_vmem [thread:$0]  %s61, 2048, %s63, [#allocation7], 64, 64, 4
    $region17: #{tpu_custom_call.1} parent=1 // pred_fallthru
      _
    // Predicated region
    $region18: #{tpu_custom_call.1} parent=1 // pred_check
      _
    $region19: #{tpu_custom_call.1} parent=1 // pred_check_branch
      %70 = sbr.rel (0) target = $region21
    $region20: #{tpu_custom_call.1} parent=1 // pred_region
      _
    $region21: #{tpu_custom_call.1} parent=1 // pred_fallthru
      _
    // Predicated region
    $region22: #{tpu_custom_call.1} parent=1 // pred_check
      _
    $region23: #{tpu_custom_call.1} parent=1 // pred_check_branch
      %72 = sbr.rel (0) target = $region25
    $region24: #{tpu_custom_call.1} parent=1 // pred_region
      %74 = vsyncadd [#allocation10], 0
      %s75 = sshll.u32 %s5, 4
      %s76 = int_to_ptr.hbm [resolvable:$true] %s75
      %s77 = sshll.u32 [#allocation9], 4
      %s78 = int_to_ptr.vmem [resolvable:$true] %s77
      %83 = dma.hbm_to_vmem [thread:$0]  %s76, 1024, %s78, [#allocation10], 64, 64, 4
    $region25: #{tpu_custom_call.1} parent=1 // pred_fallthru
      _
    // Predicated region
    $region26: #{tpu_custom_call.1} parent=1 // pred_check
      _
    $region27: #{tpu_custom_call.1} parent=1 // pred_check_branch
      %85 = sbr.rel (0) target = $region29
    $region28: #{tpu_custom_call.1} parent=1 // pred_region
      _
    $region29: #{tpu_custom_call.1} parent=1 // pred_fallthru
      _
    // Predicated region
    $region30: #{tpu_custom_call.1} parent=1 // pred_check
      _
    $region31: #{tpu_custom_call.1} parent=1 // pred_check_branch
      %87 = sbr.rel (0) target = $region33
    $region32: #{tpu_custom_call.1} parent=1 // pred_region
      %89 = vsyncadd [#allocation10], 0
      %s90 = sshll.u32 %s7, 4
      %s91 = int_to_ptr.hbm [resolvable:$true] %s90
      %s92 = sshll.u32 [#allocation11], 4
      %s93 = int_to_ptr.vmem [resolvable:$true] %s92
      %98 = dma.hbm_to_vmem [thread:$0]  %s91, 2048, %s93, [#allocation10], 64, 64, 4
    $region33: #{tpu_custom_call.1} parent=1 // pred_fallthru
      _
    // Predicated region
    $region34: #{tpu_custom_call.1} parent=1 // pred_check
      _
    $region35: #{tpu_custom_call.1} parent=1 // pred_check_branch
      %100 = sbr.rel (0) target = $region37
    $region36: #{tpu_custom_call.1} parent=1 // pred_region
      _
    $region37: #{tpu_custom_call.1} parent=1 // pred_fallthru
      _
    // Predicated region
    $region38: #{tpu_custom_call.1} parent=1 // pred_check
      _
    $region39: #{tpu_custom_call.1} parent=1 // pred_check_branch
      %102 = sbr.rel (0) target = $region41
    $region40: #{tpu_custom_call.1} parent=1 // pred_region
      %104 = vsyncadd [#allocation13], 0
      %s105 = sshll.u32 %s9, 4
      %s106 = int_to_ptr.hbm [resolvable:$true] %s105
      %s107 = sshll.u32 [#allocation12], 4
      %s108 = int_to_ptr.vmem [resolvable:$true] %s107
      %113 = dma.hbm_to_vmem [thread:$0]  %s106, 2048, %s108, [#allocation13], 64, 64, 4
    $region41: #{tpu_custom_call.1} parent=1 // pred_fallthru
      _
    // Predicated region
    $region42: #{tpu_custom_call.1} parent=1 // pred_check
      _
    $region43: #{tpu_custom_call.1} parent=1 // pred_check_branch
      %115 = sbr.rel (0) target = $region45
    $region44: #{tpu_custom_call.1} parent=1 // pred_region
      _
    $region45: #{tpu_custom_call.1} parent=1 // pred_fallthru
      _
    // Predicated region
    $region46: #{tpu_custom_call.1} parent=1 // pred_check
      _
    $region47: #{tpu_custom_call.1} parent=1 // pred_check_branch
      %117 = sbr.rel (0) target = $region49
    $region48: #{tpu_custom_call.1} parent=1 // pred_region
      %119 = vsyncadd [#allocation13], 0
      %s120 = sshll.u32 %s11, 4
      %s121 = int_to_ptr.hbm [resolvable:$true] %s120
      %s122 = sshll.u32 [#allocation14], 4
      %s123 = int_to_ptr.vmem [resolvable:$true] %s122
      %128 = dma.hbm_to_vmem [thread:$0]  %s121, 2048, %s123, [#allocation13], 64, 64, 4
    $region49: #{tpu_custom_call.1} parent=1 // pred_fallthru
      _
    // Predicated region
    $region50: #{tpu_custom_call.1} parent=1 // pred_check
      _
    $region51: #{tpu_custom_call.1} parent=1 // pred_check_branch
      %130 = sbr.rel (0) target = $region53
    $region52: #{tpu_custom_call.1} parent=1 // pred_region
      _
    $region53: #{tpu_custom_call.1} parent=1 // pred_fallthru
      _
    // Predicated region
    $region54: #{tpu_custom_call.1} parent=1 // pred_check
      _
    $region55: #{tpu_custom_call.1} parent=1 // pred_check_branch
      %132 = sbr.rel (0) target = $region57
    $region56: #{tpu_custom_call.1} parent=1 // pred_region
      %134 = vsyncadd [#allocation16], 0
      %s135 = sshll.u32 %s13, 4
      %s136 = int_to_ptr.hbm [resolvable:$true] %s135
      %s137 = sshll.u32 [#allocation15], 4
      %s138 = int_to_ptr.vmem [resolvable:$true] %s137
      %143 = dma.hbm_to_vmem [thread:$0]  %s136, 2048, %s138, [#allocation16], 64, 64, 4
    $region57: #{tpu_custom_call.1} parent=1 // pred_fallthru
      _
    // Predicated region
    $region58: #{tpu_custom_call.1} parent=1 // pred_check
      _
    $region59: #{tpu_custom_call.1} parent=1 // pred_check_branch
      %145 = sbr.rel (0) target = $region61
    $region60: #{tpu_custom_call.1} parent=1 // pred_region
      _
    $region61: #{tpu_custom_call.1} parent=1 // pred_fallthru
      _
    // Predicated region
    $region62: #{tpu_custom_call.1} parent=1 // pred_check
      _
    $region63: #{tpu_custom_call.1} parent=1 // pred_check_branch
      %147 = sbr.rel (0) target = $region65
    $region64: #{tpu_custom_call.1} parent=1 // pred_region
      %149 = vsyncadd [#allocation16], 0
      %s150 = sshll.u32 %s15, 4
      %s151 = int_to_ptr.hbm [resolvable:$true] %s150
      %s152 = sshll.u32 [#allocation17], 4
      %s153 = int_to_ptr.vmem [resolvable:$true] %s152
      %158 = dma.hbm_to_vmem [thread:$0]  %s151, 1024, %s153, [#allocation16], 64, 64, 4
    $region65: #{tpu_custom_call.1} parent=1 // pred_fallthru
      _
    // Predicated region
    $region66: #{tpu_custom_call.1} parent=1 // pred_check
      _
    $region67: #{tpu_custom_call.1} parent=1 // pred_check_branch
      %160 = sbr.rel (0) target = $region69
    $region68: #{tpu_custom_call.1} parent=1 // pred_region
      _
    $region69: #{tpu_custom_call.1} parent=1 // pred_fallthru
      _
    // Predicated region
    $region70: #{tpu_custom_call.1} parent=1 // pred_check
      _
    $region71: #{tpu_custom_call.1} parent=1 // pred_check_branch
      %162 = sbr.rel (0) target = $region73
    $region72: #{tpu_custom_call.1} parent=1 // pred_region
      %164 = dma.done [#allocation4], 256
    $region73: #{tpu_custom_call.1} parent=1 // pred_fallthru
      _
    // Predicated region
    $region74: #{tpu_custom_call.1} parent=1 // pred_check
      _
    $region75: #{tpu_custom_call.1} parent=1 // pred_check_branch
      %166 = sbr.rel (0) target = $region77
    $region76: #{tpu_custom_call.1} parent=1 // pred_region
      %168 = dma.done [#allocation7], 2048
    $region77: #{tpu_custom_call.1} parent=1 // pred_fallthru
      _
    // Predicated region
    $region78: #{tpu_custom_call.1} parent=1 // pred_check
      _
    $region79: #{tpu_custom_call.1} parent=1 // pred_check_branch
      %170 = sbr.rel (0) target = $region81
    $region80: #{tpu_custom_call.1} parent=1 // pred_region
      %172 = dma.done [#allocation7], 2048
    $region81: #{tpu_custom_call.1} parent=1 // pred_fallthru
      _
    // Predicated region
    $region82: #{tpu_custom_call.1} parent=1 // pred_check
      _
    $region83: #{tpu_custom_call.1} parent=1 // pred_check_branch
      %174 = sbr.rel (0) target = $region85
    $region84: #{tpu_custom_call.1} parent=1 // pred_region
      %176 = dma.done [#allocation10], 1024
    $region85: #{tpu_custom_call.1} parent=1 // pred_fallthru
      _
    // Predicated region
    $region86: #{tpu_custom_call.1} parent=1 // pred_check
      _
    $region87: #{tpu_custom_call.1} parent=1 // pred_check_branch
      %178 = sbr.rel (0) target = $region89
    $region88: #{tpu_custom_call.1} parent=1 // pred_region
      %180 = dma.done [#allocation10], 2048
    $region89: #{tpu_custom_call.1} parent=1 // pred_fallthru
      _
    // Predicated region
    $region90: #{tpu_custom_call.1} parent=1 // pred_check
      _
    $region91: #{tpu_custom_call.1} parent=1 // pred_check_branch
      %182 = sbr.rel (0) target = $region93
    $region92: #{tpu_custom_call.1} parent=1 // pred_region
      %184 = dma.done [#allocation13], 2048
    $region93: #{tpu_custom_call.1} parent=1 // pred_fallthru
      _
    // Predicated region
    $region94: #{tpu_custom_call.1} parent=1 // pred_check
      _
    $region95: #{tpu_custom_call.1} parent=1 // pred_check_branch
      %186 = sbr.rel (0) target = $region97
    $region96: #{tpu_custom_call.1} parent=1 // pred_region
      %188 = dma.done [#allocation13], 2048
    $region97: #{tpu_custom_call.1} parent=1 // pred_fallthru
      _
    // Predicated region
    $region98: #{tpu_custom_call.1} parent=1 // pred_check
      _
    $region99: #{tpu_custom_call.1} parent=1 // pred_check_branch
      %190 = sbr.rel (0) target = $region101
    $region100: #{tpu_custom_call.1} parent=1 // pred_region
      %192 = dma.done [#allocation16], 2048
    $region101: #{tpu_custom_call.1} parent=1 // pred_fallthru
      _
    // Predicated region
    $region102: #{tpu_custom_call.1} parent=1 // pred_check
      _
    $region103: #{tpu_custom_call.1} parent=1 // pred_check_branch
      %194 = sbr.rel (0) target = $region105
    $region104: #{tpu_custom_call.1} parent=1 // pred_region
      %196 = dma.done [#allocation16], 1024
    $region105: #{tpu_custom_call.1} parent=1 // pred_fallthru
      _
    %198 = vst [vmem:[#allocation2] sm:$0xf] 0
    %199 = vst [vmem:[#allocation2 + $0xc] sm:$0xf] 0
    %v200 = vld [vmem:[#allocation3] sm:$0xf]
    %v201 = vld [vmem:[#allocation3 + $0x4] sm:$0xf]
    %s202 = scalar_lea.vmem [#allocation3], 8
    %v203 = vld [vmem:[%s202] sm:$0xf]
    %v204 = vld [vmem:[%s202 + $0x4] sm:$0xf]
    %v207 = vunpack.c.l.b16 %v200
    %v208 = vunpack.c.l.b16 %v201
    %v209 = vpack.c.b16 %v208, %v207
    %v213 = vunpack.c.l.b16 %v203
    %v214 = vunpack.c.l.b16 %v204
    %v215 = vpack.c.b16 %v214, %v213
    %v217 = vpack.c.b16 %v207, %v207
    %v218 = vpack.c.b16 %v208, %v208
    %221 = vst [vmem:[#allocation2 + $0x4] sm:$0xf] %v217
    %222 = vst [vmem:[#allocation2 + $0x8] sm:$0xf] %v218
    %v223 = vpack.c.b16 %v213, %v213
    %v224 = vpack.c.b16 %v214, %v214
    %227 = vst [vmem:[#allocation2 + $0x10] sm:$0xf] %v223
    %228 = vst [vmem:[#allocation2 + $0x14] sm:$0xf] %v224
    %v229 = vld [vmem:[#allocation2] sm:$0x8]
    %v230 = vld [vmem:[#allocation2 + $0x4] sm:$0xf]
    %v231 = vld [vmem:[#allocation2 + $0x8] sm:$0xf]
    %v232 = vld [vmem:[#allocation2 + $0xc] sm:$0x8]
    %v233 = vld [vmem:[#allocation2 + $0x10] sm:$0xf]
    %v234 = vld [vmem:[#allocation2 + $0x14] sm:$0xf]
    %v238 = vunpack.c.l.b16 %v229
    %v239 = vunpack.c.l.b16 %v230
    %v240 = vunpack.c.l.b16 %v231
    %v241 = vpack.c.b16 %v239, %v238
    %v242 = vpack.c.b16 %v240, %v240
    %vm243 = vsmask.f32 4352
    %v245 = vshrl.u32 %v241, 16
    %v247 = vrot.slane %v245, 3
    %v248 = vshll.u32 %v241, 16
    %v250 = vrot.slane %v248, 4
    %v251 = vor.u32 %v247, %v250
    %v253 = vshrl.u32 %v242, 16
    %v255 = vrot.slane %v253, 3
    %v256 = vshll.u32 %v242, 16
    %v258 = vrot.slane %v256, 4
    %v259 = vor.u32 %v255, %v258
    %v260 = vsel %vm243, %v251, %v259
    %v265 = vunpack.c.l.b16 %v232
    %v266 = vunpack.c.l.b16 %v233
    %v267 = vunpack.c.l.b16 %v234
    %v268 = vpack.c.b16 %v266, %v265
    %v269 = vpack.c.b16 %v267, %v267
    %v271 = vshrl.u32 %v268, 16
    %v273 = vrot.slane %v271, 3
    %v274 = vshll.u32 %v268, 16
    %v276 = vrot.slane %v274, 4
    %v277 = vor.u32 %v273, %v276
    %v279 = vshrl.u32 %v269, 16
    %v281 = vrot.slane %v279, 3
    %v282 = vshll.u32 %v269, 16
    %v284 = vrot.slane %v282, 4
    %v285 = vor.u32 %v281, %v284
    %v286 = vsel %vm243, %v277, %v285
    %v288 = vld [vmem:[#allocation6] sm:$0xf]
    %v289 = vld [vmem:[#allocation6 + $0x4] sm:$0xf]
    %v290 = vld [vmem:[#allocation6 + $0x8] sm:$0xf]
    %v291 = vld [vmem:[#allocation6 + $0xc] sm:$0xf]
    %v292 = vld [vmem:[#allocation6 + $0x10] sm:$0xf]
    %v293 = vld [vmem:[#allocation6 + $0x14] sm:$0xf]
    %v294 = vld [vmem:[#allocation6 + $0x18] sm:$0xf]
    %v295 = vld [vmem:[#allocation6 + $0x1c] sm:$0xf]
    %v296 = vld [vmem:[#allocation6 + $0x20] sm:$0xf]
    %v297 = vld [vmem:[#allocation6 + $0x24] sm:$0xf]
    %v298 = vld [vmem:[#allocation6 + $0x28] sm:$0xf]
    %v299 = vld [vmem:[#allocation6 + $0x2c] sm:$0xf]
    %v300 = vld [vmem:[#allocation6 + $0x30] sm:$0xf]
    %v301 = vld [vmem:[#allocation6 + $0x34] sm:$0xf]
    %v302 = vld [vmem:[#allocation6 + $0x38] sm:$0xf]
    %v303 = vld [vmem:[#allocation6 + $0x3c] sm:$0xf]
    %v304 = vpack.c.b16 %v240, %v239
    %v306 = vpack.c.b16 %v267, %v266
    %s308 = scalar_lea.vmem [#allocation6], 64
    %v309 = vld [vmem:[%s308] sm:$0xf]
    %v310 = vld [vmem:[%s308 + $0x4] sm:$0xf]
    %v311 = vld [vmem:[%s308 + $0x8] sm:$0xf]
    %v312 = vld [vmem:[%s308 + $0xc] sm:$0xf]
    %v313 = vld [vmem:[%s308 + $0x10] sm:$0xf]
    %v314 = vld [vmem:[%s308 + $0x14] sm:$0xf]
    %v315 = vld [vmem:[%s308 + $0x18] sm:$0xf]
    %v316 = vld [vmem:[%s308 + $0x1c] sm:$0xf]
    %v317 = vld [vmem:[%s308 + $0x20] sm:$0xf]
    %v318 = vld [vmem:[%s308 + $0x24] sm:$0xf]
    %v319 = vld [vmem:[%s308 + $0x28] sm:$0xf]
    %v320 = vld [vmem:[%s308 + $0x2c] sm:$0xf]
    %v321 = vld [vmem:[%s308 + $0x30] sm:$0xf]
    %v322 = vld [vmem:[%s308 + $0x34] sm:$0xf]
    %v323 = vld [vmem:[%s308 + $0x38] sm:$0xf]
    %v324 = vld [vmem:[%s308 + $0x3c] sm:$0xf]
    %v341 = vunpack.c.l.b16 %v309
    %v342 = vunpack.c.l.b16 %v310
    %v343 = vunpack.c.l.b16 %v311
    %v344 = vunpack.c.l.b16 %v312
    %v345 = vunpack.c.l.b16 %v313
    %v346 = vunpack.c.l.b16 %v314
    %v347 = vunpack.c.l.b16 %v315
    %v348 = vunpack.c.l.b16 %v316
    %v349 = vunpack.c.l.b16 %v317
    %v350 = vunpack.c.l.b16 %v318
    %v351 = vunpack.c.l.b16 %v319
    %v352 = vunpack.c.l.b16 %v320
    %v353 = vunpack.c.l.b16 %v321
    %v354 = vunpack.c.l.b16 %v322
    %v355 = vunpack.c.l.b16 %v323
    %v356 = vunpack.c.l.b16 %v324
    %v357 = vpack.c.b16 %v342, %v341
    %v358 = vpack.c.b16 %v344, %v343
    %v359 = vpack.c.b16 %v346, %v345
    %v360 = vpack.c.b16 %v348, %v347
    %v361 = vpack.c.b16 %v350, %v349
    %v362 = vpack.c.b16 %v352, %v351
    %v363 = vpack.c.b16 %v354, %v353
    %v364 = vpack.c.b16 %v356, %v355
    %373 = vmatpush.bf16.msra.mxu0 %v364
    %374 = vmatpush.bf16.msra.mxu0 %v363
    %375 = vmatpush.bf16.msra.mxu0 %v362
    %376 = vmatpush.bf16.msra.mxu0 %v361
    %377 = vmatpush.bf16.msra.mxu0 %v360
    %378 = vmatpush.bf16.msra.mxu0 %v359
    %379 = vmatpush.bf16.msra.mxu0 %v358
    %380 = vmatpush.bf16.msra.mxu0 %v357
    %381 = vmatmul.bf16.gmra.mxu0 %v304
    %v382 = vpop.f32.mrf.mxu0
    %v383 = vadd.f32 0.0, %v382
    %v384 = vpop.f32.mrf.mxu0
    %v385 = vadd.f32 0.0, %v384
    %386 = vmatmul.bf16.gmra.mxu0 %v306
    %v387 = vpop.f32.mrf.mxu0
    %v388 = vadd.f32 0.0, %v387
    %v389 = vpop.f32.mrf.mxu0
    %v390 = vadd.f32 0.0, %v389
    %391 = vdwg.mxu0
    %v408 = vunpack.c.l.b16 %v288
    %v409 = vunpack.c.l.b16 %v289
    %v410 = vunpack.c.l.b16 %v290
    %v411 = vunpack.c.l.b16 %v291
    %v412 = vunpack.c.l.b16 %v292
    %v413 = vunpack.c.l.b16 %v293
    %v414 = vunpack.c.l.b16 %v294
    %v415 = vunpack.c.l.b16 %v295
    %v416 = vunpack.c.l.b16 %v296
    %v417 = vunpack.c.l.b16 %v297
    %v418 = vunpack.c.l.b16 %v298
    %v419 = vunpack.c.l.b16 %v299
    %v420 = vunpack.c.l.b16 %v300
    %v421 = vunpack.c.l.b16 %v301
    %v422 = vunpack.c.l.b16 %v302
    %v423 = vunpack.c.l.b16 %v303
    %v424 = vpack.c.b16 %v409, %v408
    %v425 = vpack.c.b16 %v411, %v410
    %v426 = vpack.c.b16 %v413, %v412
    %v427 = vpack.c.b16 %v415, %v414
    %v428 = vpack.c.b16 %v417, %v416
    %v429 = vpack.c.b16 %v419, %v418
    %v430 = vpack.c.b16 %v421, %v420
    %v431 = vpack.c.b16 %v423, %v422
    %440 = vmatpush.bf16.msra.mxu0 %v431
    %441 = vmatpush.bf16.msra.mxu0 %v430
    %442 = vmatpush.bf16.msra.mxu0 %v429
    %443 = vmatpush.bf16.msra.mxu0 %v428
    %444 = vmatpush.bf16.msra.mxu0 %v427
    %445 = vmatpush.bf16.msra.mxu0 %v426
    %446 = vmatpush.bf16.msra.mxu0 %v425
    %447 = vmatpush.bf16.msra.mxu0 %v424
    %448 = vmatmul.bf16.gmra.mxu0 %v260
    %v449 = vpop.f32.mrf.mxu0
    %v450 = vadd.f32 %v383, %v449
    %v451 = vpop.f32.mrf.mxu0
    %v452 = vadd.f32 %v385, %v451
    %453 = vmatmul.bf16.gmra.mxu0 %v286
    %v454 = vpop.f32.mrf.mxu0
    %v455 = vadd.f32 %v388, %v454
    %v456 = vpop.f32.mrf.mxu0
    %v457 = vadd.f32 %v390, %v456
    %458 = vdwg.mxu0
    %v459 = vld [vmem:[%s2] sm:$0x1]
    %v461 = vperm.slane %v459, 0
    %v463 = vadd.f32 %v450, %v461
    %v464 = vadd.f32 %v452, %v461
    %v465 = vadd.f32 %v455, %v461
    %v466 = vadd.f32 %v457, %v461
    %v467 = vmax.f32 %v463, 0.0
    %v468 = vmax.f32 %v464, 0.0
    %v469 = vmax.f32 %v465, 0.0
    %v470 = vmax.f32 %v466, 0.0
    %v471 = vpack.c.bf16 %v467, %v467
    %v472 = vpack.c.bf16 %v468, %v468
    %v473 = vpack.c.bf16 %v469, %v469
    %v474 = vpack.c.bf16 %v470, %v470
    %475 = vst [vmem:[#allocation2 + $0x4] sm:$0xf] %v471
    %476 = vst [vmem:[#allocation2 + $0x8] sm:$0xf] %v472
    %477 = vst [vmem:[#allocation2 + $0x10] sm:$0xf] %v473
    %478 = vst [vmem:[#allocation2 + $0x14] sm:$0xf] %v474
    %v479 = vld [vmem:[#allocation2] sm:$0x8]
    %v480 = vld [vmem:[#allocation2 + $0x4] sm:$0xf]
    %v481 = vld [vmem:[#allocation2 + $0x8] sm:$0xf]
    %v482 = vld [vmem:[#allocation2 + $0xc] sm:$0x8]
    %v483 = vld [vmem:[#allocation2 + $0x10] sm:$0xf]
    %v484 = vld [vmem:[#allocation2 + $0x14] sm:$0xf]
    %v488 = vunpack.c.l.b16 %v479
    %v489 = vunpack.c.l.b16 %v480
    %v490 = vunpack.c.l.b16 %v481
    %v491 = vpack.c.b16 %v489, %v488
    %v492 = vpack.c.b16 %v490, %v490
    %v494 = vshrl.u32 %v491, 16
    %v496 = vrot.slane %v494, 3
    %v497 = vshll.u32 %v491, 16
    %v499 = vrot.slane %v497, 4
    %v500 = vor.u32 %v496, %v499
    %v502 = vshrl.u32 %v492, 16
    %v504 = vrot.slane %v502, 3
    %v505 = vshll.u32 %v492, 16
    %v507 = vrot.slane %v505, 4
    %v508 = vor.u32 %v504, %v507
    %v509 = vsel %vm243, %v500, %v508
    %v514 = vunpack.c.l.b16 %v482
    %v515 = vunpack.c.l.b16 %v483
    %v516 = vunpack.c.l.b16 %v484
    %v517 = vpack.c.b16 %v515, %v514
    %v518 = vpack.c.b16 %v516, %v516
    %v520 = vshrl.u32 %v517, 16
    %v522 = vrot.slane %v520, 3
    %v523 = vshll.u32 %v517, 16
    %v525 = vrot.slane %v523, 4
    %v526 = vor.u32 %v522, %v525
    %v528 = vshrl.u32 %v518, 16
    %v530 = vrot.slane %v528, 3
    %v531 = vshll.u32 %v518, 16
    %v533 = vrot.slane %v531, 4
    %v534 = vor.u32 %v530, %v533
    %v535 = vsel %vm243, %v526, %v534
    %v537 = vld [vmem:[#allocation8] sm:$0xf]
    %v538 = vld [vmem:[#allocation8 + $0x4] sm:$0xf]
    %v539 = vld [vmem:[#allocation8 + $0x8] sm:$0xf]
    %v540 = vld [vmem:[#allocation8 + $0xc] sm:$0xf]
    %v541 = vld [vmem:[#allocation8 + $0x10] sm:$0xf]
    %v542 = vld [vmem:[#allocation8 + $0x14] sm:$0xf]
    %v543 = vld [vmem:[#allocation8 + $0x18] sm:$0xf]
    %v544 = vld [vmem:[#allocation8 + $0x1c] sm:$0xf]
    %v545 = vld [vmem:[#allocation8 + $0x20] sm:$0xf]
    %v546 = vld [vmem:[#allocation8 + $0x24] sm:$0xf]
    %v547 = vld [vmem:[#allocation8 + $0x28] sm:$0xf]
    %v548 = vld [vmem:[#allocation8 + $0x2c] sm:$0xf]
    %v549 = vld [vmem:[#allocation8 + $0x30] sm:$0xf]
    %v550 = vld [vmem:[#allocation8 + $0x34] sm:$0xf]
    %v551 = vld [vmem:[#allocation8 + $0x38] sm:$0xf]
    %v552 = vld [vmem:[#allocation8 + $0x3c] sm:$0xf]
    %v553 = vpack.c.b16 %v490, %v489
    %v555 = vpack.c.b16 %v516, %v515
    %s557 = scalar_lea.vmem [#allocation8], 64
    %v558 = vld [vmem:[%s557] sm:$0xf]
    %v559 = vld [vmem:[%s557 + $0x4] sm:$0xf]
    %v560 = vld [vmem:[%s557 + $0x8] sm:$0xf]
    %v561 = vld [vmem:[%s557 + $0xc] sm:$0xf]
    %v562 = vld [vmem:[%s557 + $0x10] sm:$0xf]
    %v563 = vld [vmem:[%s557 + $0x14] sm:$0xf]
    %v564 = vld [vmem:[%s557 + $0x18] sm:$0xf]
    %v565 = vld [vmem:[%s557 + $0x1c] sm:$0xf]
    %v566 = vld [vmem:[%s557 + $0x20] sm:$0xf]
    %v567 = vld [vmem:[%s557 + $0x24] sm:$0xf]
    %v568 = vld [vmem:[%s557 + $0x28] sm:$0xf]
    %v569 = vld [vmem:[%s557 + $0x2c] sm:$0xf]
    %v570 = vld [vmem:[%s557 + $0x30] sm:$0xf]
    %v571 = vld [vmem:[%s557 + $0x34] sm:$0xf]
    %v572 = vld [vmem:[%s557 + $0x38] sm:$0xf]
    %v573 = vld [vmem:[%s557 + $0x3c] sm:$0xf]
    %v590 = vunpack.c.l.b16 %v558
    %v591 = vunpack.c.l.b16 %v559
    %v592 = vunpack.c.l.b16 %v560
    %v593 = vunpack.c.l.b16 %v561
    %v594 = vunpack.c.l.b16 %v562
    %v595 = vunpack.c.l.b16 %v563
    %v596 = vunpack.c.l.b16 %v564
    %v597 = vunpack.c.l.b16 %v565
    %v598 = vunpack.c.l.b16 %v566
    %v599 = vunpack.c.l.b16 %v567
    %v600 = vunpack.c.l.b16 %v568
    %v601 = vunpack.c.l.b16 %v569
    %v602 = vunpack.c.l.b16 %v570
    %v603 = vunpack.c.l.b16 %v571
    %v604 = vunpack.c.l.b16 %v572
    %v605 = vunpack.c.l.b16 %v573
    %v606 = vpack.c.b16 %v591, %v590
    %v607 = vpack.c.b16 %v593, %v592
    %v608 = vpack.c.b16 %v595, %v594
    %v609 = vpack.c.b16 %v597, %v596
    %v610 = vpack.c.b16 %v599, %v598
    %v611 = vpack.c.b16 %v601, %v600
    %v612 = vpack.c.b16 %v603, %v602
    %v613 = vpack.c.b16 %v605, %v604
    %622 = vmatpush.bf16.msra.mxu0 %v613
    %623 = vmatpush.bf16.msra.mxu0 %v612
    %624 = vmatpush.bf16.msra.mxu0 %v611
    %625 = vmatpush.bf16.msra.mxu0 %v610
    %626 = vmatpush.bf16.msra.mxu0 %v609
    %627 = vmatpush.bf16.msra.mxu0 %v608
    %628 = vmatpush.bf16.msra.mxu0 %v607
    %629 = vmatpush.bf16.msra.mxu0 %v606
    %630 = vmatmul.bf16.gmra.mxu0 %v553
    %v631 = vpop.f32.mrf.mxu0
    %v632 = vadd.f32 0.0, %v631
    %v633 = vpop.f32.mrf.mxu0
    %v634 = vadd.f32 0.0, %v633
    %635 = vmatmul.bf16.gmra.mxu0 %v555
    %v636 = vpop.f32.mrf.mxu0
    %v637 = vadd.f32 0.0, %v636
    %v638 = vpop.f32.mrf.mxu0
    %v639 = vadd.f32 0.0, %v638
    %640 = vdwg.mxu0
    %v657 = vunpack.c.l.b16 %v537
    %v658 = vunpack.c.l.b16 %v538
    %v659 = vunpack.c.l.b16 %v539
    %v660 = vunpack.c.l.b16 %v540
    %v661 = vunpack.c.l.b16 %v541
    %v662 = vunpack.c.l.b16 %v542
    %v663 = vunpack.c.l.b16 %v543
    %v664 = vunpack.c.l.b16 %v544
    %v665 = vunpack.c.l.b16 %v545
    %v666 = vunpack.c.l.b16 %v546
    %v667 = vunpack.c.l.b16 %v547
    %v668 = vunpack.c.l.b16 %v548
    %v669 = vunpack.c.l.b16 %v549
    %v670 = vunpack.c.l.b16 %v550
    %v671 = vunpack.c.l.b16 %v551
    %v672 = vunpack.c.l.b16 %v552
    %v673 = vpack.c.b16 %v658, %v657
    %v674 = vpack.c.b16 %v660, %v659
    %v675 = vpack.c.b16 %v662, %v661
    %v676 = vpack.c.b16 %v664, %v663
    %v677 = vpack.c.b16 %v666, %v665
    %v678 = vpack.c.b16 %v668, %v667
    %v679 = vpack.c.b16 %v670, %v669
    %v680 = vpack.c.b16 %v672, %v671
    %689 = vmatpush.bf16.msra.mxu0 %v680
    %690 = vmatpush.bf16.msra.mxu0 %v679
    %691 = vmatpush.bf16.msra.mxu0 %v678
    %692 = vmatpush.bf16.msra.mxu0 %v677
    %693 = vmatpush.bf16.msra.mxu0 %v676
    %694 = vmatpush.bf16.msra.mxu0 %v675
    %695 = vmatpush.bf16.msra.mxu0 %v674
    %696 = vmatpush.bf16.msra.mxu0 %v673
    %697 = vmatmul.bf16.gmra.mxu0 %v509
    %v698 = vpop.f32.mrf.mxu0
    %v699 = vadd.f32 %v632, %v698
    %v700 = vpop.f32.mrf.mxu0
    %v701 = vadd.f32 %v634, %v700
    %702 = vmatmul.bf16.gmra.mxu0 %v535
    %v703 = vpop.f32.mrf.mxu0
    %v704 = vadd.f32 %v637, %v703
    %v705 = vpop.f32.mrf.mxu0
    %v706 = vadd.f32 %v639, %v705
    %707 = vdwg.mxu0
    %v708 = vld [vmem:[%s4] sm:$0x1]
    %v710 = vperm.slane %v708, 0
    %v712 = vadd.f32 %v699, %v710
    %v713 = vadd.f32 %v701, %v710
    %v714 = vadd.f32 %v704, %v710
    %v715 = vadd.f32 %v706, %v710
    %v716 = vmax.f32 %v712, 0.0
    %v717 = vmax.f32 %v713, 0.0
    %v718 = vmax.f32 %v714, 0.0
    %v719 = vmax.f32 %v715, 0.0
    %v720 = vld [vmem:[#allocation9] sm:$0xf]
    %v721 = vld [vmem:[#allocation9 + $0x4] sm:$0xf]
    %v722 = vld [vmem:[#allocation9 + $0x8] sm:$0xf]
    %v723 = vld [vmem:[#allocation9 + $0xc] sm:$0xf]
    %v724 = vld [vmem:[#allocation9 + $0x10] sm:$0xf]
    %v725 = vld [vmem:[#allocation9 + $0x14] sm:$0xf]
    %v726 = vld [vmem:[#allocation9 + $0x18] sm:$0xf]
    %v727 = vld [vmem:[#allocation9 + $0x1c] sm:$0xf]
    %v728 = vld [vmem:[#allocation9 + $0x20] sm:$0xf]
    %v729 = vld [vmem:[#allocation9 + $0x24] sm:$0xf]
    %v730 = vld [vmem:[#allocation9 + $0x28] sm:$0xf]
    %v731 = vld [vmem:[#allocation9 + $0x2c] sm:$0xf]
    %v732 = vld [vmem:[#allocation9 + $0x30] sm:$0xf]
    %v733 = vld [vmem:[#allocation9 + $0x34] sm:$0xf]
    %v734 = vld [vmem:[#allocation9 + $0x38] sm:$0xf]
    %v735 = vld [vmem:[#allocation9 + $0x3c] sm:$0xf]
    %v736 = vld [vmem:[%s6] sm:$0x1]
    %v738 = vperm.slane %v736, 0
    %v756 = vunpack.c.l.b16 %v720
    %v757 = vunpack.c.l.b16 %v721
    %v758 = vunpack.c.l.b16 %v722
    %v759 = vunpack.c.l.b16 %v723
    %v760 = vunpack.c.l.b16 %v724
    %v761 = vunpack.c.l.b16 %v725
    %v762 = vunpack.c.l.b16 %v726
    %v763 = vunpack.c.l.b16 %v727
    %v764 = vunpack.c.l.b16 %v728
    %v765 = vunpack.c.l.b16 %v729
    %v766 = vunpack.c.l.b16 %v730
    %v767 = vunpack.c.l.b16 %v731
    %v768 = vunpack.c.l.b16 %v732
    %v769 = vunpack.c.l.b16 %v733
    %v770 = vunpack.c.l.b16 %v734
    %v771 = vunpack.c.l.b16 %v735
    %v772 = vpack.c.b16 %v757, %v756
    %v773 = vpack.c.b16 %v759, %v758
    %v774 = vpack.c.b16 %v761, %v760
    %v775 = vpack.c.b16 %v763, %v762
    %v776 = vpack.c.b16 %v765, %v764
    %v777 = vpack.c.b16 %v767, %v766
    %v778 = vpack.c.b16 %v769, %v768
    %v779 = vpack.c.b16 %v771, %v770
    %788 = vmatpush.bf16.msra.mxu0 %v779
    %789 = vmatpush.bf16.msra.mxu0 %v778
    %790 = vmatpush.bf16.msra.mxu0 %v777
    %791 = vmatpush.bf16.msra.mxu0 %v776
    %792 = vmatpush.bf16.msra.mxu0 %v775
    %793 = vmatpush.bf16.msra.mxu0 %v774
    %794 = vmatpush.bf16.msra.mxu0 %v773
    %795 = vmatpush.bf16.msra.mxu0 %v772
    %796 = vmatmul.bf16.gmra.mxu0 %v209
    %v797 = vpop.f32.mrf.mxu0
    %v798 = vadd.f32 %v738, %v797
    %v799 = vpop.f32.mrf.mxu0
    %v800 = vadd.f32 %v738, %v799
    %801 = vmatmul.bf16.gmra.mxu0 %v215
    %v802 = vpop.f32.mrf.mxu0
    %v803 = vadd.f32 %v738, %v802
    %v804 = vpop.f32.mrf.mxu0
    %v805 = vadd.f32 %v738, %v804
    %806 = vdwg.mxu0
    %v807 = vadd.f32 %v716, %v798
    %v808 = vadd.f32 %v717, %v800
    %v809 = vadd.f32 %v718, %v803
    %v810 = vadd.f32 %v719, %v805
    %v811 = vmax.f32 %v807, 0.0
    %v812 = vmax.f32 %v808, 0.0
    %v813 = vmax.f32 %v809, 0.0
    %v814 = vmax.f32 %v810, 0.0
    %v815 = vpack.c.bf16 %v811, %v811
    %v816 = vpack.c.bf16 %v812, %v812
    %v817 = vpack.c.bf16 %v813, %v813
    %v818 = vpack.c.bf16 %v814, %v814
    %819 = vst [vmem:[#allocation2 + $0x4] sm:$0xf] %v815
    %820 = vst [vmem:[#allocation2 + $0x8] sm:$0xf] %v816
    %821 = vst [vmem:[#allocation2 + $0x10] sm:$0xf] %v817
    %822 = vst [vmem:[#allocation2 + $0x14] sm:$0xf] %v818
    %v823 = vld [vmem:[#allocation2] sm:$0x8]
    %v824 = vld [vmem:[#allocation2 + $0x4] sm:$0xf]
    %v825 = vld [vmem:[#allocation2 + $0x8] sm:$0x7]
    %v826 = vld [vmem:[#allocation2 + $0xc] sm:$0x8]
    %v827 = vld [vmem:[#allocation2 + $0x10] sm:$0xf]
    %v828 = vld [vmem:[#allocation2 + $0x14] sm:$0x7]
    %v832 = vunpack.c.l.b16 %v823
    %v833 = vunpack.c.l.b16 %v824
    %v834 = vunpack.c.l.b16 %v825
    %v835 = vpack.c.b16 %v833, %v832
    %v836 = vpack.c.b16 %v834, %v834
    %vm837 = vcmask 1044480
    %v838 = vrot.slane %v835, 3
    %v839 = vrot.slane %v836, 3
    %v840 = vsel %vm837, %v838, %v839
    %v845 = vunpack.c.l.b16 %v826
    %v846 = vunpack.c.l.b16 %v827
    %v847 = vunpack.c.l.b16 %v828
    %v848 = vpack.c.b16 %v846, %v845
    %v849 = vpack.c.b16 %v847, %v847
    %v850 = vrot.slane %v848, 3
    %v851 = vrot.slane %v849, 3
    %v852 = vsel %vm837, %v850, %v851
    %v854 = vld [vmem:[#allocation11] sm:$0xf]
    %v855 = vld [vmem:[#allocation11 + $0x4] sm:$0xf]
    %v856 = vld [vmem:[#allocation11 + $0x8] sm:$0xf]
    %v857 = vld [vmem:[#allocation11 + $0xc] sm:$0xf]
    %v858 = vld [vmem:[#allocation11 + $0x10] sm:$0xf]
    %v859 = vld [vmem:[#allocation11 + $0x14] sm:$0xf]
    %v860 = vld [vmem:[#allocation11 + $0x18] sm:$0xf]
    %v861 = vld [vmem:[#allocation11 + $0x1c] sm:$0xf]
    %v862 = vld [vmem:[#allocation11 + $0x20] sm:$0xf]
    %v863 = vld [vmem:[#allocation11 + $0x24] sm:$0xf]
    %v864 = vld [vmem:[#allocation11 + $0x28] sm:$0xf]
    %v865 = vld [vmem:[#allocation11 + $0x2c] sm:$0xf]
    %v866 = vld [vmem:[#allocation11 + $0x30] sm:$0xf]
    %v867 = vld [vmem:[#allocation11 + $0x34] sm:$0xf]
    %v868 = vld [vmem:[#allocation11 + $0x38] sm:$0xf]
    %v869 = vld [vmem:[#allocation11 + $0x3c] sm:$0xf]
    %v870 = vld [vmem:[#allocation2 + $0x8] sm:$0xf]
    %v871 = vld [vmem:[#allocation2 + $0x14] sm:$0xf]
    %v873 = vunpack.c.l.b16 %v870
    %v874 = vpack.c.b16 %v873, %v833
    %v877 = vunpack.c.l.b16 %v871
    %v878 = vpack.c.b16 %v877, %v846
    %s880 = scalar_lea.vmem [#allocation11], 64
    %v881 = vld [vmem:[%s880] sm:$0xf]
    %v882 = vld [vmem:[%s880 + $0x4] sm:$0xf]
    %v883 = vld [vmem:[%s880 + $0x8] sm:$0xf]
    %v884 = vld [vmem:[%s880 + $0xc] sm:$0xf]
    %v885 = vld [vmem:[%s880 + $0x10] sm:$0xf]
    %v886 = vld [vmem:[%s880 + $0x14] sm:$0xf]
    %v887 = vld [vmem:[%s880 + $0x18] sm:$0xf]
    %v888 = vld [vmem:[%s880 + $0x1c] sm:$0xf]
    %v889 = vld [vmem:[%s880 + $0x20] sm:$0xf]
    %v890 = vld [vmem:[%s880 + $0x24] sm:$0xf]
    %v891 = vld [vmem:[%s880 + $0x28] sm:$0xf]
    %v892 = vld [vmem:[%s880 + $0x2c] sm:$0xf]
    %v893 = vld [vmem:[%s880 + $0x30] sm:$0xf]
    %v894 = vld [vmem:[%s880 + $0x34] sm:$0xf]
    %v895 = vld [vmem:[%s880 + $0x38] sm:$0xf]
    %v896 = vld [vmem:[%s880 + $0x3c] sm:$0xf]
    %v913 = vunpack.c.l.b16 %v881
    %v914 = vunpack.c.l.b16 %v882
    %v915 = vunpack.c.l.b16 %v883
    %v916 = vunpack.c.l.b16 %v884
    %v917 = vunpack.c.l.b16 %v885
    %v918 = vunpack.c.l.b16 %v886
    %v919 = vunpack.c.l.b16 %v887
    %v920 = vunpack.c.l.b16 %v888
    %v921 = vunpack.c.l.b16 %v889
    %v922 = vunpack.c.l.b16 %v890
    %v923 = vunpack.c.l.b16 %v891
    %v924 = vunpack.c.l.b16 %v892
    %v925 = vunpack.c.l.b16 %v893
    %v926 = vunpack.c.l.b16 %v894
    %v927 = vunpack.c.l.b16 %v895
    %v928 = vunpack.c.l.b16 %v896
    %v929 = vpack.c.b16 %v914, %v913
    %v930 = vpack.c.b16 %v916, %v915
    %v931 = vpack.c.b16 %v918, %v917
    %v932 = vpack.c.b16 %v920, %v919
    %v933 = vpack.c.b16 %v922, %v921
    %v934 = vpack.c.b16 %v924, %v923
    %v935 = vpack.c.b16 %v926, %v925
    %v936 = vpack.c.b16 %v928, %v927
    %945 = vmatpush.bf16.msra.mxu0 %v936
    %946 = vmatpush.bf16.msra.mxu0 %v935
    %947 = vmatpush.bf16.msra.mxu0 %v934
    %948 = vmatpush.bf16.msra.mxu0 %v933
    %949 = vmatpush.bf16.msra.mxu0 %v932
    %950 = vmatpush.bf16.msra.mxu0 %v931
    %951 = vmatpush.bf16.msra.mxu0 %v930
    %952 = vmatpush.bf16.msra.mxu0 %v929
    %953 = vmatmul.bf16.gmra.mxu0 %v874
    %v954 = vpop.f32.mrf.mxu0
    %v955 = vadd.f32 0.0, %v954
    %v956 = vpop.f32.mrf.mxu0
    %v957 = vadd.f32 0.0, %v956
    %958 = vmatmul.bf16.gmra.mxu0 %v878
    %v959 = vpop.f32.mrf.mxu0
    %v960 = vadd.f32 0.0, %v959
    %v961 = vpop.f32.mrf.mxu0
    %v962 = vadd.f32 0.0, %v961
    %963 = vdwg.mxu0
    %v980 = vunpack.c.l.b16 %v854
    %v981 = vunpack.c.l.b16 %v855
    %v982 = vunpack.c.l.b16 %v856
    %v983 = vunpack.c.l.b16 %v857
    %v984 = vunpack.c.l.b16 %v858
    %v985 = vunpack.c.l.b16 %v859
    %v986 = vunpack.c.l.b16 %v860
    %v987 = vunpack.c.l.b16 %v861
    %v988 = vunpack.c.l.b16 %v862
    %v989 = vunpack.c.l.b16 %v863
    %v990 = vunpack.c.l.b16 %v864
    %v991 = vunpack.c.l.b16 %v865
    %v992 = vunpack.c.l.b16 %v866
    %v993 = vunpack.c.l.b16 %v867
    %v994 = vunpack.c.l.b16 %v868
    %v995 = vunpack.c.l.b16 %v869
    %v996 = vpack.c.b16 %v981, %v980
    %v997 = vpack.c.b16 %v983, %v982
    %v998 = vpack.c.b16 %v985, %v984
    %v999 = vpack.c.b16 %v987, %v986
    %v1000 = vpack.c.b16 %v989, %v988
    %v1001 = vpack.c.b16 %v991, %v990
    %v1002 = vpack.c.b16 %v993, %v992
    %v1003 = vpack.c.b16 %v995, %v994
    %1012 = vmatpush.bf16.msra.mxu0 %v1003
    %1013 = vmatpush.bf16.msra.mxu0 %v1002
    %1014 = vmatpush.bf16.msra.mxu0 %v1001
    %1015 = vmatpush.bf16.msra.mxu0 %v1000
    %1016 = vmatpush.bf16.msra.mxu0 %v999
    %1017 = vmatpush.bf16.msra.mxu0 %v998
    %1018 = vmatpush.bf16.msra.mxu0 %v997
    %1019 = vmatpush.bf16.msra.mxu0 %v996
    %1020 = vmatmul.bf16.gmra.mxu0 %v840
    %v1021 = vpop.f32.mrf.mxu0
    %v1022 = vadd.f32 %v955, %v1021
    %v1023 = vpop.f32.mrf.mxu0
    %v1024 = vadd.f32 %v957, %v1023
    %1025 = vmatmul.bf16.gmra.mxu0 %v852
    %v1026 = vpop.f32.mrf.mxu0
    %v1027 = vadd.f32 %v960, %v1026
    %v1028 = vpop.f32.mrf.mxu0
    %v1029 = vadd.f32 %v962, %v1028
    %1030 = vdwg.mxu0
    %v1031 = vld [vmem:[%s8] sm:$0x1]
    %v1033 = vperm.slane %v1031, 0
    %v1035 = vadd.f32 %v1022, %v1033
    %v1036 = vadd.f32 %v1024, %v1033
    %v1037 = vadd.f32 %v1027, %v1033
    %v1038 = vadd.f32 %v1029, %v1033
    %v1039 = vmax.f32 %v1035, 0.0
    %v1040 = vmax.f32 %v1036, 0.0
    %v1041 = vmax.f32 %v1037, 0.0
    %v1042 = vmax.f32 %v1038, 0.0
    %v1043 = vpack.c.bf16 %v1039, %v1039
    %v1044 = vpack.c.bf16 %v1040, %v1040
    %v1045 = vpack.c.bf16 %v1041, %v1041
    %v1046 = vpack.c.bf16 %v1042, %v1042
    %1047 = vst [vmem:[#allocation2 + $0x4] sm:$0xf] %v1043
    %1048 = vst [vmem:[#allocation2 + $0x8] sm:$0xf] %v1044
    %1049 = vst [vmem:[#allocation2 + $0x10] sm:$0xf] %v1045
    %1050 = vst [vmem:[#allocation2 + $0x14] sm:$0xf] %v1046
    %v1051 = vld [vmem:[#allocation2] sm:$0x8]
    %v1052 = vld [vmem:[#allocation2 + $0x4] sm:$0xf]
    %v1053 = vld [vmem:[#allocation2 + $0x8] sm:$0x7]
    %v1054 = vld [vmem:[#allocation2 + $0xc] sm:$0x8]
    %v1055 = vld [vmem:[#allocation2 + $0x10] sm:$0xf]
    %v1056 = vld [vmem:[#allocation2 + $0x14] sm:$0x7]
    %v1060 = vunpack.c.l.b16 %v1051
    %v1061 = vunpack.c.l.b16 %v1052
    %v1062 = vunpack.c.l.b16 %v1053
    %v1063 = vpack.c.b16 %v1061, %v1060
    %v1064 = vpack.c.b16 %v1062, %v1062
    %v1065 = vrot.slane %v1063, 3
    %v1066 = vrot.slane %v1064, 3
    %v1067 = vsel %vm837, %v1065, %v1066
    %v1072 = vunpack.c.l.b16 %v1054
    %v1073 = vunpack.c.l.b16 %v1055
    %v1074 = vunpack.c.l.b16 %v1056
    %v1075 = vpack.c.b16 %v1073, %v1072
    %v1076 = vpack.c.b16 %v1074, %v1074
    %v1077 = vrot.slane %v1075, 3
    %v1078 = vrot.slane %v1076, 3
    %v1079 = vsel %vm837, %v1077, %v1078
    %v1081 = vld [vmem:[#allocation12] sm:$0xf]
    %v1082 = vld [vmem:[#allocation12 + $0x4] sm:$0xf]
    %v1083 = vld [vmem:[#allocation12 + $0x8] sm:$0xf]
    %v1084 = vld [vmem:[#allocation12 + $0xc] sm:$0xf]
    %v1085 = vld [vmem:[#allocation12 + $0x10] sm:$0xf]
    %v1086 = vld [vmem:[#allocation12 + $0x14] sm:$0xf]
    %v1087 = vld [vmem:[#allocation12 + $0x18] sm:$0xf]
    %v1088 = vld [vmem:[#allocation12 + $0x1c] sm:$0xf]
    %v1089 = vld [vmem:[#allocation12 + $0x20] sm:$0xf]
    %v1090 = vld [vmem:[#allocation12 + $0x24] sm:$0xf]
    %v1091 = vld [vmem:[#allocation12 + $0x28] sm:$0xf]
    %v1092 = vld [vmem:[#allocation12 + $0x2c] sm:$0xf]
    %v1093 = vld [vmem:[#allocation12 + $0x30] sm:$0xf]
    %v1094 = vld [vmem:[#allocation12 + $0x34] sm:$0xf]
    %v1095 = vld [vmem:[#allocation12 + $0x38] sm:$0xf]
    %v1096 = vld [vmem:[#allocation12 + $0x3c] sm:$0xf]
    %v1097 = vld [vmem:[#allocation2 + $0x8] sm:$0xf]
    %v1098 = vld [vmem:[#allocation2 + $0x14] sm:$0xf]
    %v1100 = vunpack.c.l.b16 %v1097
    %v1101 = vpack.c.b16 %v1100, %v1061
    %v1104 = vunpack.c.l.b16 %v1098
    %v1105 = vpack.c.b16 %v1104, %v1073
    %s1107 = scalar_lea.vmem [#allocation12], 64
    %v1108 = vld [vmem:[%s1107] sm:$0xf]
    %v1109 = vld [vmem:[%s1107 + $0x4] sm:$0xf]
    %v1110 = vld [vmem:[%s1107 + $0x8] sm:$0xf]
    %v1111 = vld [vmem:[%s1107 + $0xc] sm:$0xf]
    %v1112 = vld [vmem:[%s1107 + $0x10] sm:$0xf]
    %v1113 = vld [vmem:[%s1107 + $0x14] sm:$0xf]
    %v1114 = vld [vmem:[%s1107 + $0x18] sm:$0xf]
    %v1115 = vld [vmem:[%s1107 + $0x1c] sm:$0xf]
    %v1116 = vld [vmem:[%s1107 + $0x20] sm:$0xf]
    %v1117 = vld [vmem:[%s1107 + $0x24] sm:$0xf]
    %v1118 = vld [vmem:[%s1107 + $0x28] sm:$0xf]
    %v1119 = vld [vmem:[%s1107 + $0x2c] sm:$0xf]
    %v1120 = vld [vmem:[%s1107 + $0x30] sm:$0xf]
    %v1121 = vld [vmem:[%s1107 + $0x34] sm:$0xf]
    %v1122 = vld [vmem:[%s1107 + $0x38] sm:$0xf]
    %v1123 = vld [vmem:[%s1107 + $0x3c] sm:$0xf]
    %v1140 = vunpack.c.l.b16 %v1108
    %v1141 = vunpack.c.l.b16 %v1109
    %v1142 = vunpack.c.l.b16 %v1110
    %v1143 = vunpack.c.l.b16 %v1111
    %v1144 = vunpack.c.l.b16 %v1112
    %v1145 = vunpack.c.l.b16 %v1113
    %v1146 = vunpack.c.l.b16 %v1114
    %v1147 = vunpack.c.l.b16 %v1115
    %v1148 = vunpack.c.l.b16 %v1116
    %v1149 = vunpack.c.l.b16 %v1117
    %v1150 = vunpack.c.l.b16 %v1118
    %v1151 = vunpack.c.l.b16 %v1119
    %v1152 = vunpack.c.l.b16 %v1120
    %v1153 = vunpack.c.l.b16 %v1121
    %v1154 = vunpack.c.l.b16 %v1122
    %v1155 = vunpack.c.l.b16 %v1123
    %v1156 = vpack.c.b16 %v1141, %v1140
    %v1157 = vpack.c.b16 %v1143, %v1142
    %v1158 = vpack.c.b16 %v1145, %v1144
    %v1159 = vpack.c.b16 %v1147, %v1146
    %v1160 = vpack.c.b16 %v1149, %v1148
    %v1161 = vpack.c.b16 %v1151, %v1150
    %v1162 = vpack.c.b16 %v1153, %v1152
    %v1163 = vpack.c.b16 %v1155, %v1154
    %1172 = vmatpush.bf16.msra.mxu0 %v1163
    %1173 = vmatpush.bf16.msra.mxu0 %v1162
    %1174 = vmatpush.bf16.msra.mxu0 %v1161
    %1175 = vmatpush.bf16.msra.mxu0 %v1160
    %1176 = vmatpush.bf16.msra.mxu0 %v1159
    %1177 = vmatpush.bf16.msra.mxu0 %v1158
    %1178 = vmatpush.bf16.msra.mxu0 %v1157
    %1179 = vmatpush.bf16.msra.mxu0 %v1156
    %1180 = vmatmul.bf16.gmra.mxu0 %v1101
    %v1181 = vpop.f32.mrf.mxu0
    %v1182 = vadd.f32 0.0, %v1181
    %v1183 = vpop.f32.mrf.mxu0
    %v1184 = vadd.f32 0.0, %v1183
    %1185 = vmatmul.bf16.gmra.mxu0 %v1105
    %v1186 = vpop.f32.mrf.mxu0
    %v1187 = vadd.f32 0.0, %v1186
    %v1188 = vpop.f32.mrf.mxu0
    %v1189 = vadd.f32 0.0, %v1188
    %1190 = vdwg.mxu0
    %v1207 = vunpack.c.l.b16 %v1081
    %v1208 = vunpack.c.l.b16 %v1082
    %v1209 = vunpack.c.l.b16 %v1083
    %v1210 = vunpack.c.l.b16 %v1084
    %v1211 = vunpack.c.l.b16 %v1085
    %v1212 = vunpack.c.l.b16 %v1086
    %v1213 = vunpack.c.l.b16 %v1087
    %v1214 = vunpack.c.l.b16 %v1088
    %v1215 = vunpack.c.l.b16 %v1089
    %v1216 = vunpack.c.l.b16 %v1090
    %v1217 = vunpack.c.l.b16 %v1091
    %v1218 = vunpack.c.l.b16 %v1092
    %v1219 = vunpack.c.l.b16 %v1093
    %v1220 = vunpack.c.l.b16 %v1094
    %v1221 = vunpack.c.l.b16 %v1095
    %v1222 = vunpack.c.l.b16 %v1096
    %v1223 = vpack.c.b16 %v1208, %v1207
    %v1224 = vpack.c.b16 %v1210, %v1209
    %v1225 = vpack.c.b16 %v1212, %v1211
    %v1226 = vpack.c.b16 %v1214, %v1213
    %v1227 = vpack.c.b16 %v1216, %v1215
    %v1228 = vpack.c.b16 %v1218, %v1217
    %v1229 = vpack.c.b16 %v1220, %v1219
    %v1230 = vpack.c.b16 %v1222, %v1221
    %1239 = vmatpush.bf16.msra.mxu0 %v1230
    %1240 = vmatpush.bf16.msra.mxu0 %v1229
    %1241 = vmatpush.bf16.msra.mxu0 %v1228
    %1242 = vmatpush.bf16.msra.mxu0 %v1227
    %1243 = vmatpush.bf16.msra.mxu0 %v1226
    %1244 = vmatpush.bf16.msra.mxu0 %v1225
    %1245 = vmatpush.bf16.msra.mxu0 %v1224
    %1246 = vmatpush.bf16.msra.mxu0 %v1223
    %1247 = vmatmul.bf16.gmra.mxu0 %v1067
    %v1248 = vpop.f32.mrf.mxu0
    %v1249 = vadd.f32 %v1182, %v1248
    %v1250 = vpop.f32.mrf.mxu0
    %v1251 = vadd.f32 %v1184, %v1250
    %1252 = vmatmul.bf16.gmra.mxu0 %v1079
    %v1253 = vpop.f32.mrf.mxu0
    %v1254 = vadd.f32 %v1187, %v1253
    %v1255 = vpop.f32.mrf.mxu0
    %v1256 = vadd.f32 %v1189, %v1255
    %1257 = vdwg.mxu0
    %v1258 = vld [vmem:[%s10] sm:$0x1]
    %v1260 = vperm.slane %v1258, 0
    %v1262 = vadd.f32 %v1249, %v1260
    %v1263 = vadd.f32 %v1251, %v1260
    %v1264 = vadd.f32 %v1254, %v1260
    %v1265 = vadd.f32 %v1256, %v1260
    %v1266 = vmax.f32 %v1262, 0.0
    %v1267 = vmax.f32 %v1263, 0.0
    %v1268 = vmax.f32 %v1264, 0.0
    %v1269 = vmax.f32 %v1265, 0.0
    %v1270 = vadd.f32 %v1266, %v811
    %v1271 = vadd.f32 %v1267, %v812
    %v1272 = vadd.f32 %v1268, %v813
    %v1273 = vadd.f32 %v1269, %v814
    %v1274 = vmax.f32 %v1270, 0.0
    %v1275 = vmax.f32 %v1271, 0.0
    %v1276 = vmax.f32 %v1272, 0.0
    %v1277 = vmax.f32 %v1273, 0.0
    %v1278 = vpack.c.bf16 %v1274, %v1274
    %v1279 = vpack.c.bf16 %v1275, %v1275
    %v1280 = vpack.c.bf16 %v1276, %v1276
    %v1281 = vpack.c.bf16 %v1277, %v1277
    %1282 = vst [vmem:[#allocation2 + $0x4] sm:$0xf] %v1278
    %1283 = vst [vmem:[#allocation2 + $0x8] sm:$0xf] %v1279
    %1284 = vst [vmem:[#allocation2 + $0x10] sm:$0xf] %v1280
    %1285 = vst [vmem:[#allocation2 + $0x14] sm:$0xf] %v1281
    %v1286 = vld [vmem:[#allocation2] sm:$0xc]
    %v1287 = vld [vmem:[#allocation2 + $0x4] sm:$0xf]
    %v1288 = vld [vmem:[#allocation2 + $0x8] sm:$0x3]
    %v1289 = vld [vmem:[#allocation2 + $0xc] sm:$0xc]
    %v1290 = vld [vmem:[#allocation2 + $0x10] sm:$0xf]
    %v1291 = vld [vmem:[#allocation2 + $0x14] sm:$0x3]
    %v1295 = vunpack.c.l.b16 %v1286
    %v1296 = vunpack.c.l.b16 %v1287
    %v1297 = vunpack.c.l.b16 %v1288
    %v1298 = vpack.c.b16 %v1296, %v1295
    %v1299 = vpack.c.b16 %v1297, %v1297
    %vm1300 = vcmask 1045504
    %v1301 = vrot.slane %v1298, 2
    %v1302 = vrot.slane %v1299, 2
    %v1303 = vsel %vm1300, %v1301, %v1302
    %v1308 = vunpack.c.l.b16 %v1289
    %v1309 = vunpack.c.l.b16 %v1290
    %v1310 = vunpack.c.l.b16 %v1291
    %v1311 = vpack.c.b16 %v1309, %v1308
    %v1312 = vpack.c.b16 %v1310, %v1310
    %v1313 = vrot.slane %v1311, 2
    %v1314 = vrot.slane %v1312, 2
    %v1315 = vsel %vm1300, %v1313, %v1314
    %v1317 = vld [vmem:[#allocation14] sm:$0xf]
    %v1318 = vld [vmem:[#allocation14 + $0x4] sm:$0xf]
    %v1319 = vld [vmem:[#allocation14 + $0x8] sm:$0xf]
    %v1320 = vld [vmem:[#allocation14 + $0xc] sm:$0xf]
    %v1321 = vld [vmem:[#allocation14 + $0x10] sm:$0xf]
    %v1322 = vld [vmem:[#allocation14 + $0x14] sm:$0xf]
    %v1323 = vld [vmem:[#allocation14 + $0x18] sm:$0xf]
    %v1324 = vld [vmem:[#allocation14 + $0x1c] sm:$0xf]
    %v1325 = vld [vmem:[#allocation14 + $0x20] sm:$0xf]
    %v1326 = vld [vmem:[#allocation14 + $0x24] sm:$0xf]
    %v1327 = vld [vmem:[#allocation14 + $0x28] sm:$0xf]
    %v1328 = vld [vmem:[#allocation14 + $0x2c] sm:$0xf]
    %v1329 = vld [vmem:[#allocation14 + $0x30] sm:$0xf]
    %v1330 = vld [vmem:[#allocation14 + $0x34] sm:$0xf]
    %v1331 = vld [vmem:[#allocation14 + $0x38] sm:$0xf]
    %v1332 = vld [vmem:[#allocation14 + $0x3c] sm:$0xf]
    %v1333 = vld [vmem:[#allocation2 + $0x8] sm:$0xf]
    %v1334 = vld [vmem:[#allocation2 + $0x14] sm:$0xf]
    %v1336 = vunpack.c.l.b16 %v1333
    %v1337 = vpack.c.b16 %v1336, %v1296
    %v1340 = vunpack.c.l.b16 %v1334
    %v1341 = vpack.c.b16 %v1340, %v1309
    %s1343 = scalar_lea.vmem [#allocation14], 64
    %v1344 = vld [vmem:[%s1343] sm:$0xf]
    %v1345 = vld [vmem:[%s1343 + $0x4] sm:$0xf]
    %v1346 = vld [vmem:[%s1343 + $0x8] sm:$0xf]
    %v1347 = vld [vmem:[%s1343 + $0xc] sm:$0xf]
    %v1348 = vld [vmem:[%s1343 + $0x10] sm:$0xf]
    %v1349 = vld [vmem:[%s1343 + $0x14] sm:$0xf]
    %v1350 = vld [vmem:[%s1343 + $0x18] sm:$0xf]
    %v1351 = vld [vmem:[%s1343 + $0x1c] sm:$0xf]
    %v1352 = vld [vmem:[%s1343 + $0x20] sm:$0xf]
    %v1353 = vld [vmem:[%s1343 + $0x24] sm:$0xf]
    %v1354 = vld [vmem:[%s1343 + $0x28] sm:$0xf]
    %v1355 = vld [vmem:[%s1343 + $0x2c] sm:$0xf]
    %v1356 = vld [vmem:[%s1343 + $0x30] sm:$0xf]
    %v1357 = vld [vmem:[%s1343 + $0x34] sm:$0xf]
    %v1358 = vld [vmem:[%s1343 + $0x38] sm:$0xf]
    %v1359 = vld [vmem:[%s1343 + $0x3c] sm:$0xf]
    %v1376 = vunpack.c.l.b16 %v1344
    %v1377 = vunpack.c.l.b16 %v1345
    %v1378 = vunpack.c.l.b16 %v1346
    %v1379 = vunpack.c.l.b16 %v1347
    %v1380 = vunpack.c.l.b16 %v1348
    %v1381 = vunpack.c.l.b16 %v1349
    %v1382 = vunpack.c.l.b16 %v1350
    %v1383 = vunpack.c.l.b16 %v1351
    %v1384 = vunpack.c.l.b16 %v1352
    %v1385 = vunpack.c.l.b16 %v1353
    %v1386 = vunpack.c.l.b16 %v1354
    %v1387 = vunpack.c.l.b16 %v1355
    %v1388 = vunpack.c.l.b16 %v1356
    %v1389 = vunpack.c.l.b16 %v1357
    %v1390 = vunpack.c.l.b16 %v1358
    %v1391 = vunpack.c.l.b16 %v1359
    %v1392 = vpack.c.b16 %v1377, %v1376
    %v1393 = vpack.c.b16 %v1379, %v1378
    %v1394 = vpack.c.b16 %v1381, %v1380
    %v1395 = vpack.c.b16 %v1383, %v1382
    %v1396 = vpack.c.b16 %v1385, %v1384
    %v1397 = vpack.c.b16 %v1387, %v1386
    %v1398 = vpack.c.b16 %v1389, %v1388
    %v1399 = vpack.c.b16 %v1391, %v1390
    %1408 = vmatpush.bf16.msra.mxu0 %v1399
    %1409 = vmatpush.bf16.msra.mxu0 %v1398
    %1410 = vmatpush.bf16.msra.mxu0 %v1397
    %1411 = vmatpush.bf16.msra.mxu0 %v1396
    %1412 = vmatpush.bf16.msra.mxu0 %v1395
    %1413 = vmatpush.bf16.msra.mxu0 %v1394
    %1414 = vmatpush.bf16.msra.mxu0 %v1393
    %1415 = vmatpush.bf16.msra.mxu0 %v1392
    %1416 = vmatmul.bf16.gmra.mxu0 %v1337
    %v1417 = vpop.f32.mrf.mxu0
    %v1418 = vadd.f32 0.0, %v1417
    %v1419 = vpop.f32.mrf.mxu0
    %v1420 = vadd.f32 0.0, %v1419
    %1421 = vmatmul.bf16.gmra.mxu0 %v1341
    %v1422 = vpop.f32.mrf.mxu0
    %v1423 = vadd.f32 0.0, %v1422
    %v1424 = vpop.f32.mrf.mxu0
    %v1425 = vadd.f32 0.0, %v1424
    %1426 = vdwg.mxu0
    %v1443 = vunpack.c.l.b16 %v1317
    %v1444 = vunpack.c.l.b16 %v1318
    %v1445 = vunpack.c.l.b16 %v1319
    %v1446 = vunpack.c.l.b16 %v1320
    %v1447 = vunpack.c.l.b16 %v1321
    %v1448 = vunpack.c.l.b16 %v1322
    %v1449 = vunpack.c.l.b16 %v1323
    %v1450 = vunpack.c.l.b16 %v1324
    %v1451 = vunpack.c.l.b16 %v1325
    %v1452 = vunpack.c.l.b16 %v1326
    %v1453 = vunpack.c.l.b16 %v1327
    %v1454 = vunpack.c.l.b16 %v1328
    %v1455 = vunpack.c.l.b16 %v1329
    %v1456 = vunpack.c.l.b16 %v1330
    %v1457 = vunpack.c.l.b16 %v1331
    %v1458 = vunpack.c.l.b16 %v1332
    %v1459 = vpack.c.b16 %v1444, %v1443
    %v1460 = vpack.c.b16 %v1446, %v1445
    %v1461 = vpack.c.b16 %v1448, %v1447
    %v1462 = vpack.c.b16 %v1450, %v1449
    %v1463 = vpack.c.b16 %v1452, %v1451
    %v1464 = vpack.c.b16 %v1454, %v1453
    %v1465 = vpack.c.b16 %v1456, %v1455
    %v1466 = vpack.c.b16 %v1458, %v1457
    %1475 = vmatpush.bf16.msra.mxu0 %v1466
    %1476 = vmatpush.bf16.msra.mxu0 %v1465
    %1477 = vmatpush.bf16.msra.mxu0 %v1464
    %1478 = vmatpush.bf16.msra.mxu0 %v1463
    %1479 = vmatpush.bf16.msra.mxu0 %v1462
    %1480 = vmatpush.bf16.msra.mxu0 %v1461
    %1481 = vmatpush.bf16.msra.mxu0 %v1460
    %1482 = vmatpush.bf16.msra.mxu0 %v1459
    %1483 = vmatmul.bf16.gmra.mxu0 %v1303
    %v1484 = vpop.f32.mrf.mxu0
    %v1485 = vadd.f32 %v1418, %v1484
    %v1486 = vpop.f32.mrf.mxu0
    %v1487 = vadd.f32 %v1420, %v1486
    %1488 = vmatmul.bf16.gmra.mxu0 %v1315
    %v1489 = vpop.f32.mrf.mxu0
    %v1490 = vadd.f32 %v1423, %v1489
    %v1491 = vpop.f32.mrf.mxu0
    %v1492 = vadd.f32 %v1425, %v1491
    %1493 = vdwg.mxu0
    %v1494 = vld [vmem:[%s12] sm:$0x1]
    %v1496 = vperm.slane %v1494, 0
    %v1498 = vadd.f32 %v1485, %v1496
    %v1499 = vadd.f32 %v1487, %v1496
    %v1500 = vadd.f32 %v1490, %v1496
    %v1501 = vadd.f32 %v1492, %v1496
    %v1502 = vmax.f32 %v1498, 0.0
    %v1503 = vmax.f32 %v1499, 0.0
    %v1504 = vmax.f32 %v1500, 0.0
    %v1505 = vmax.f32 %v1501, 0.0
    %v1506 = vpack.c.bf16 %v1502, %v1502
    %v1507 = vpack.c.bf16 %v1503, %v1503
    %v1508 = vpack.c.bf16 %v1504, %v1504
    %v1509 = vpack.c.bf16 %v1505, %v1505
    %1510 = vst [vmem:[#allocation2 + $0x4] sm:$0xf] %v1506
    %1511 = vst [vmem:[#allocation2 + $0x8] sm:$0xf] %v1507
    %1512 = vst [vmem:[#allocation2 + $0x10] sm:$0xf] %v1508
    %1513 = vst [vmem:[#allocation2 + $0x14] sm:$0xf] %v1509
    %v1514 = vld [vmem:[#allocation2] sm:$0xc]
    %v1515 = vld [vmem:[#allocation2 + $0x4] sm:$0xf]
    %v1516 = vld [vmem:[#allocation2 + $0x8] sm:$0x3]
    %v1517 = vld [vmem:[#allocation2 + $0xc] sm:$0xc]
    %v1518 = vld [vmem:[#allocation2 + $0x10] sm:$0xf]
    %v1519 = vld [vmem:[#allocation2 + $0x14] sm:$0x3]
    %v1523 = vunpack.c.l.b16 %v1514
    %v1524 = vunpack.c.l.b16 %v1515
    %v1525 = vunpack.c.l.b16 %v1516
    %v1526 = vpack.c.b16 %v1524, %v1523
    %v1527 = vpack.c.b16 %v1525, %v1525
    %v1528 = vrot.slane %v1526, 2
    %v1529 = vrot.slane %v1527, 2
    %v1530 = vsel %vm1300, %v1528, %v1529
    %v1535 = vunpack.c.l.b16 %v1517
    %v1536 = vunpack.c.l.b16 %v1518
    %v1537 = vunpack.c.l.b16 %v1519
    %v1538 = vpack.c.b16 %v1536, %v1535
    %v1539 = vpack.c.b16 %v1537, %v1537
    %v1540 = vrot.slane %v1538, 2
    %v1541 = vrot.slane %v1539, 2
    %v1542 = vsel %vm1300, %v1540, %v1541
    %v1544 = vld [vmem:[#allocation15] sm:$0xf]
    %v1545 = vld [vmem:[#allocation15 + $0x4] sm:$0xf]
    %v1546 = vld [vmem:[#allocation15 + $0x8] sm:$0xf]
    %v1547 = vld [vmem:[#allocation15 + $0xc] sm:$0xf]
    %v1548 = vld [vmem:[#allocation15 + $0x10] sm:$0xf]
    %v1549 = vld [vmem:[#allocation15 + $0x14] sm:$0xf]
    %v1550 = vld [vmem:[#allocation15 + $0x18] sm:$0xf]
    %v1551 = vld [vmem:[#allocation15 + $0x1c] sm:$0xf]
    %v1552 = vld [vmem:[#allocation15 + $0x20] sm:$0xf]
    %v1553 = vld [vmem:[#allocation15 + $0x24] sm:$0xf]
    %v1554 = vld [vmem:[#allocation15 + $0x28] sm:$0xf]
    %v1555 = vld [vmem:[#allocation15 + $0x2c] sm:$0xf]
    %v1556 = vld [vmem:[#allocation15 + $0x30] sm:$0xf]
    %v1557 = vld [vmem:[#allocation15 + $0x34] sm:$0xf]
    %v1558 = vld [vmem:[#allocation15 + $0x38] sm:$0xf]
    %v1559 = vld [vmem:[#allocation15 + $0x3c] sm:$0xf]
    %v1560 = vld [vmem:[#allocation2 + $0x8] sm:$0xf]
    %v1561 = vld [vmem:[#allocation2 + $0x14] sm:$0xf]
    %v1563 = vunpack.c.l.b16 %v1560
    %v1564 = vpack.c.b16 %v1563, %v1524
    %v1567 = vunpack.c.l.b16 %v1561
    %v1568 = vpack.c.b16 %v1567, %v1536
    %s1570 = scalar_lea.vmem [#allocation15], 64
    %v1571 = vld [vmem:[%s1570] sm:$0xf]
    %v1572 = vld [vmem:[%s1570 + $0x4] sm:$0xf]
    %v1573 = vld [vmem:[%s1570 + $0x8] sm:$0xf]
    %v1574 = vld [vmem:[%s1570 + $0xc] sm:$0xf]
    %v1575 = vld [vmem:[%s1570 + $0x10] sm:$0xf]
    %v1576 = vld [vmem:[%s1570 + $0x14] sm:$0xf]
    %v1577 = vld [vmem:[%s1570 + $0x18] sm:$0xf]
    %v1578 = vld [vmem:[%s1570 + $0x1c] sm:$0xf]
    %v1579 = vld [vmem:[%s1570 + $0x20] sm:$0xf]
    %v1580 = vld [vmem:[%s1570 + $0x24] sm:$0xf]
    %v1581 = vld [vmem:[%s1570 + $0x28] sm:$0xf]
    %v1582 = vld [vmem:[%s1570 + $0x2c] sm:$0xf]
    %v1583 = vld [vmem:[%s1570 + $0x30] sm:$0xf]
    %v1584 = vld [vmem:[%s1570 + $0x34] sm:$0xf]
    %v1585 = vld [vmem:[%s1570 + $0x38] sm:$0xf]
    %v1586 = vld [vmem:[%s1570 + $0x3c] sm:$0xf]
    %v1603 = vunpack.c.l.b16 %v1571
    %v1604 = vunpack.c.l.b16 %v1572
    %v1605 = vunpack.c.l.b16 %v1573
    %v1606 = vunpack.c.l.b16 %v1574
    %v1607 = vunpack.c.l.b16 %v1575
    %v1608 = vunpack.c.l.b16 %v1576
    %v1609 = vunpack.c.l.b16 %v1577
    %v1610 = vunpack.c.l.b16 %v1578
    %v1611 = vunpack.c.l.b16 %v1579
    %v1612 = vunpack.c.l.b16 %v1580
    %v1613 = vunpack.c.l.b16 %v1581
    %v1614 = vunpack.c.l.b16 %v1582
    %v1615 = vunpack.c.l.b16 %v1583
    %v1616 = vunpack.c.l.b16 %v1584
    %v1617 = vunpack.c.l.b16 %v1585
    %v1618 = vunpack.c.l.b16 %v1586
    %v1619 = vpack.c.b16 %v1604, %v1603
    %v1620 = vpack.c.b16 %v1606, %v1605
    %v1621 = vpack.c.b16 %v1608, %v1607
    %v1622 = vpack.c.b16 %v1610, %v1609
    %v1623 = vpack.c.b16 %v1612, %v1611
    %v1624 = vpack.c.b16 %v1614, %v1613
    %v1625 = vpack.c.b16 %v1616, %v1615
    %v1626 = vpack.c.b16 %v1618, %v1617
    %1635 = vmatpush.bf16.msra.mxu0 %v1626
    %1636 = vmatpush.bf16.msra.mxu0 %v1625
    %1637 = vmatpush.bf16.msra.mxu0 %v1624
    %1638 = vmatpush.bf16.msra.mxu0 %v1623
    %1639 = vmatpush.bf16.msra.mxu0 %v1622
    %1640 = vmatpush.bf16.msra.mxu0 %v1621
    %1641 = vmatpush.bf16.msra.mxu0 %v1620
    %1642 = vmatpush.bf16.msra.mxu0 %v1619
    %1643 = vmatmul.bf16.gmra.mxu0 %v1564
    %v1644 = vpop.f32.mrf.mxu0
    %v1645 = vadd.f32 0.0, %v1644
    %v1646 = vpop.f32.mrf.mxu0
    %v1647 = vadd.f32 0.0, %v1646
    %1648 = vmatmul.bf16.gmra.mxu0 %v1568
    %v1649 = vpop.f32.mrf.mxu0
    %v1650 = vadd.f32 0.0, %v1649
    %v1651 = vpop.f32.mrf.mxu0
    %v1652 = vadd.f32 0.0, %v1651
    %1653 = vdwg.mxu0
    %v1670 = vunpack.c.l.b16 %v1544
    %v1671 = vunpack.c.l.b16 %v1545
    %v1672 = vunpack.c.l.b16 %v1546
    %v1673 = vunpack.c.l.b16 %v1547
    %v1674 = vunpack.c.l.b16 %v1548
    %v1675 = vunpack.c.l.b16 %v1549
    %v1676 = vunpack.c.l.b16 %v1550
    %v1677 = vunpack.c.l.b16 %v1551
    %v1678 = vunpack.c.l.b16 %v1552
    %v1679 = vunpack.c.l.b16 %v1553
    %v1680 = vunpack.c.l.b16 %v1554
    %v1681 = vunpack.c.l.b16 %v1555
    %v1682 = vunpack.c.l.b16 %v1556
    %v1683 = vunpack.c.l.b16 %v1557
    %v1684 = vunpack.c.l.b16 %v1558
    %v1685 = vunpack.c.l.b16 %v1559
    %v1686 = vpack.c.b16 %v1671, %v1670
    %v1687 = vpack.c.b16 %v1673, %v1672
    %v1688 = vpack.c.b16 %v1675, %v1674
    %v1689 = vpack.c.b16 %v1677, %v1676
    %v1690 = vpack.c.b16 %v1679, %v1678
    %v1691 = vpack.c.b16 %v1681, %v1680
    %v1692 = vpack.c.b16 %v1683, %v1682
    %v1693 = vpack.c.b16 %v1685, %v1684
    %1702 = vmatpush.bf16.msra.mxu0 %v1693
    %1703 = vmatpush.bf16.msra.mxu0 %v1692
    %1704 = vmatpush.bf16.msra.mxu0 %v1691
    %1705 = vmatpush.bf16.msra.mxu0 %v1690
    %1706 = vmatpush.bf16.msra.mxu0 %v1689
    %1707 = vmatpush.bf16.msra.mxu0 %v1688
    %1708 = vmatpush.bf16.msra.mxu0 %v1687
    %1709 = vmatpush.bf16.msra.mxu0 %v1686
    %1710 = vmatmul.bf16.gmra.mxu0 %v1530
    %v1711 = vpop.f32.mrf.mxu0
    %v1712 = vadd.f32 %v1645, %v1711
    %v1713 = vpop.f32.mrf.mxu0
    %v1714 = vadd.f32 %v1647, %v1713
    %1715 = vmatmul.bf16.gmra.mxu0 %v1542
    %v1716 = vpop.f32.mrf.mxu0
    %v1717 = vadd.f32 %v1650, %v1716
    %v1718 = vpop.f32.mrf.mxu0
    %v1719 = vadd.f32 %v1652, %v1718
    %1720 = vdwg.mxu0
    %v1721 = vld [vmem:[%s14] sm:$0x1]
    %v1723 = vperm.slane %v1721, 0
    %v1725 = vadd.f32 %v1712, %v1723
    %v1726 = vadd.f32 %v1714, %v1723
    %v1727 = vadd.f32 %v1717, %v1723
    %v1728 = vadd.f32 %v1719, %v1723
    %v1729 = vmax.f32 %v1725, 0.0
    %v1730 = vmax.f32 %v1726, 0.0
    %v1731 = vmax.f32 %v1727, 0.0
    %v1732 = vmax.f32 %v1728, 0.0
    %v1733 = vld [vmem:[#allocation17] sm:$0xf]
    %v1734 = vld [vmem:[#allocation17 + $0x4] sm:$0xf]
    %v1735 = vld [vmem:[#allocation17 + $0x8] sm:$0xf]
    %v1736 = vld [vmem:[#allocation17 + $0xc] sm:$0xf]
    %v1737 = vld [vmem:[#allocation17 + $0x10] sm:$0xf]
    %v1738 = vld [vmem:[#allocation17 + $0x14] sm:$0xf]
    %v1739 = vld [vmem:[#allocation17 + $0x18] sm:$0xf]
    %v1740 = vld [vmem:[#allocation17 + $0x1c] sm:$0xf]
    %v1741 = vld [vmem:[#allocation17 + $0x20] sm:$0xf]
    %v1742 = vld [vmem:[#allocation17 + $0x24] sm:$0xf]
    %v1743 = vld [vmem:[#allocation17 + $0x28] sm:$0xf]
    %v1744 = vld [vmem:[#allocation17 + $0x2c] sm:$0xf]
    %v1745 = vld [vmem:[#allocation17 + $0x30] sm:$0xf]
    %v1746 = vld [vmem:[#allocation17 + $0x34] sm:$0xf]
    %v1747 = vld [vmem:[#allocation17 + $0x38] sm:$0xf]
    %v1748 = vld [vmem:[#allocation17 + $0x3c] sm:$0xf]
    %v1749 = vld [vmem:[%s16] sm:$0x1]
    %v1751 = vperm.slane %v1749, 0
    %v1757 = vunpack.c.l.b16 %v1278
    %v1758 = vunpack.c.l.b16 %v1279
    %v1759 = vunpack.c.l.b16 %v1280
    %v1760 = vunpack.c.l.b16 %v1281
    %v1761 = vpack.c.b16 %v1758, %v1757
    %v1762 = vpack.c.b16 %v1760, %v1759
    %v1781 = vunpack.c.l.b16 %v1733
    %v1782 = vunpack.c.l.b16 %v1734
    %v1783 = vunpack.c.l.b16 %v1735
    %v1784 = vunpack.c.l.b16 %v1736
    %v1785 = vunpack.c.l.b16 %v1737
    %v1786 = vunpack.c.l.b16 %v1738
    %v1787 = vunpack.c.l.b16 %v1739
    %v1788 = vunpack.c.l.b16 %v1740
    %v1789 = vunpack.c.l.b16 %v1741
    %v1790 = vunpack.c.l.b16 %v1742
    %v1791 = vunpack.c.l.b16 %v1743
    %v1792 = vunpack.c.l.b16 %v1744
    %v1793 = vunpack.c.l.b16 %v1745
    %v1794 = vunpack.c.l.b16 %v1746
    %v1795 = vunpack.c.l.b16 %v1747
    %v1796 = vunpack.c.l.b16 %v1748
    %v1797 = vpack.c.b16 %v1782, %v1781
    %v1798 = vpack.c.b16 %v1784, %v1783
    %v1799 = vpack.c.b16 %v1786, %v1785
    %v1800 = vpack.c.b16 %v1788, %v1787
    %v1801 = vpack.c.b16 %v1790, %v1789
    %v1802 = vpack.c.b16 %v1792, %v1791
    %v1803 = vpack.c.b16 %v1794, %v1793
    %v1804 = vpack.c.b16 %v1796, %v1795
    %1813 = vmatpush.bf16.msra.mxu0 %v1804
    %1814 = vmatpush.bf16.msra.mxu0 %v1803
    %1815 = vmatpush.bf16.msra.mxu0 %v1802
    %1816 = vmatpush.bf16.msra.mxu0 %v1801
    %1817 = vmatpush.bf16.msra.mxu0 %v1800
    %1818 = vmatpush.bf16.msra.mxu0 %v1799
    %1819 = vmatpush.bf16.msra.mxu0 %v1798
    %1820 = vmatpush.bf16.msra.mxu0 %v1797
    %1821 = vmatmul.bf16.gmra.mxu0 %v1761
    %v1822 = vpop.f32.mrf.mxu0
    %v1823 = vadd.f32 %v1751, %v1822
    %v1824 = vpop.f32.mrf.mxu0
    %v1825 = vadd.f32 %v1751, %v1824
    %1826 = vmatmul.bf16.gmra.mxu0 %v1762
    %v1827 = vpop.f32.mrf.mxu0
    %v1828 = vadd.f32 %v1751, %v1827
    %v1829 = vpop.f32.mrf.mxu0
    %v1830 = vadd.f32 %v1751, %v1829
    %1831 = vdwg.mxu0
    %v1832 = vadd.f32 %v1729, %v1823
    %v1833 = vadd.f32 %v1730, %v1825
    %v1834 = vadd.f32 %v1731, %v1828
    %v1835 = vadd.f32 %v1732, %v1830
    %v1836 = vmax.f32 %v1832, 0.0
    %v1837 = vmax.f32 %v1833, 0.0
    %v1838 = vmax.f32 %v1834, 0.0
    %v1839 = vmax.f32 %v1835, 0.0
    %1840 = vst [vmem:[#allocation18] sm:$0xff] %v1836
    %1841 = vst [vmem:[#allocation18 + $0x8] sm:$0xff] %v1837
    %s1842 = scalar_lea.vmem [#allocation18], 16
    %1843 = vst [vmem:[%s1842] sm:$0xff] %v1838
    %1844 = vst [vmem:[%s1842 + $0x8] sm:$0xff] %v1839
    // Predicated region
    $region106: #{tpu_custom_call.1} parent=1 // pred_check
      _
    $region107: #{tpu_custom_call.1} parent=1 // pred_check_branch
      %1846 = sbr.rel (0) target = $region109
    $region108: #{tpu_custom_call.1} parent=1 // pred_region
      %1848 = vsyncadd [#allocation5], 0
      %s1849 = sshll.u32 [#allocation18], 4
      %s1850 = int_to_ptr.vmem [resolvable:$true] %s1849
      %s1851 = sshll.u32 %s17, 4
      %s1852 = int_to_ptr.hbm [resolvable:$true] %s1851
      %1857 = dma.vmem_to_hbm [thread:$0]  %s1850, 512, %s1852, [#allocation5], 128, 128, 8
    $region109: #{tpu_custom_call.1} parent=1 // pred_fallthru
      _
    // Predicated region
    $region110: #{tpu_custom_call.1} parent=1 // pred_check
      _
    $region111: #{tpu_custom_call.1} parent=1 // pred_check_branch
      %1859 = sbr.rel (0) target = $region113
    $region112: #{tpu_custom_call.1} parent=1 // pred_region
      %1861 = dma.done [#allocation5], 512
    $region113: #{tpu_custom_call.1} parent=1 // pred_fallthru
      _
    %1862 = vsyncpa [#allocation4], 1
    %1863 = vsyncpa [#allocation7], 1
    %1864 = vsyncpa [#allocation10], 1
    %1865 = vsyncpa [#allocation13], 1
    %1866 = vsyncpa [#allocation16], 1
    %1867 = vsyncpa [#allocation5], 1

</llo_original>
